<compile_context>
chip_gen: v6e
topology: v6e:2x2x1
jax: 0.10.0
libtpu: 0.0.40
codegen_flags: <defaults>
</compile_context>

<pallas_src>
import functools
import math

import jax
import jax.numpy as jnp
from jax.experimental import pallas as pl
from jax.experimental.pallas import tpu as pltpu


def _layer_norm(x, gamma, beta, eps=1e-5):
    # PyTorch nn.LayerNorm: biased variance over the last dim, f32 math.
    mu = jnp.mean(x, axis=-1, keepdims=True)
    var = jnp.mean((x - mu) ** 2, axis=-1, keepdims=True)
    return (x - mu) * jax.lax.rsqrt(var + eps) * gamma + beta


def encoder_kernel(
    x_ref, bias_ref,
    g1_ref, b1_ref, wqkv_ref, bqkv_ref, wo_ref, bo_ref,
    g2_ref, b2_ref, w1_ref, fb1_ref, w2_ref, fb2_ref,
    o_ref,
    ctx_scr,
    *, H,
):
    """One grid step = (batch block b, encoder layer n).

    The layer axis is innermost and the output BlockSpec returns the same block for
    every layer, so the residual stream stays resident in the output VMEM buffer for
    all N layers of a batch block and is written back to HBM only once.
    """
    layer = pl.program_id(1)

    # Load the input activations into the resident output buffer at the first layer.
    @pl.when(layer == 0)
    def _():
        o_ref[...] = x_ref[...]

    Bb, S, D = o_ref.shape
    dk = D // H
    scale = 1.0 / math.sqrt(dk)
    bf16 = jnp.bfloat16

    x = o_ref[...].astype(jnp.float32)            # (Bb, S, D) residual stream
    x2 = x.reshape(Bb * S, D)                     # row-wise view for matmuls

    # Additive attention mask bias, precomputed in the wrapper as (Bb, 1, S) of
    # {0, -1e30}.  Kept un-broadcast: the `s + bias` add broadcasts per head.
    mask_bias = bias_ref[...]                     # (Bb, 1, S) f32

    # ---------------- sublayer 0: pre-LN multi-head self-attention + residual ----------
    h = _layer_norm(x2, g1_ref[0], b1_ref[0])                    # (Bb*S, D) f32
    qkv = jnp.dot(h.astype(bf16), wqkv_ref[0],                   # fused QKV projection
                  preferred_element_type=jnp.float32) + bqkv_ref[0]   # (Bb*S, 3D) f32

    q = (qkv[:, 0:D] * scale).reshape(Bb, S, D)   # fold 1/sqrt(dk) into Q once
    k = qkv[:, D:2 * D].reshape(Bb, S, D)
    v = qkv[:, 2 * D:3 * D].reshape(Bb, S, D)

    # Heads unrolled (H is small).  Each head's context slice is stored into a VMEM
    # scratch; the output projection is a single full-depth matmul afterwards so the
    # MXU contraction depth is D instead of dk and no f32 accumulator stays live
    # across the whole loop.
    for hh in range(H):
        sl = slice(hh * dk, (hh + 1) * dk)
        qh = q[:, :, sl].astype(bf16)                            # (Bb, S, dk)
        kh = k[:, :, sl].astype(bf16)
        vh = v[:, :, sl].astype(bf16)
        s = jnp.einsum('bqd,bkd->bqk', qh, kh,
                       preferred_element_type=jnp.float32)       # (Bb, S, S) f32
        s = s + mask_bias                                        # broadcast (Bb,1,S)
        m = jnp.max(s, axis=-1, keepdims=True)
        e = jnp.exp(s - m)
        p = e * pl.reciprocal(jnp.sum(e, axis=-1, keepdims=True), approx=True)
        ctx = jnp.einsum('bqk,bkd->bqd', p.astype(bf16), vh,
                         preferred_element_type=jnp.float32)     # (Bb, S, dk)
        ctx_scr[:, sl] = ctx.reshape(Bb * S, dk).astype(bf16)

    att = jnp.dot(ctx_scr[...], wo_ref[0],                       # one (Bb*S,D)x(D,D)
                  preferred_element_type=jnp.float32)            # (Bb*S, D) f32
    x2 = x2 + att + bo_ref[0]

    # ---------------- sublayer 1: pre-LN position-wise feed-forward + residual ----------
    h = _layer_norm(x2, g2_ref[0], b2_ref[0])
    ff = jnp.dot(h.astype(bf16), w1_ref[0],
                 preferred_element_type=jnp.float32) + fb1_ref[0]
    ff = jnp.maximum(ff, 0.0)
    ff = jnp.dot(ff.astype(bf16), w2_ref[0],
                 preferred_element_type=jnp.float32) + fb2_ref[0]
    x2 = x2 + ff

    # Dropout is identity in eval mode -> omitted.
    o_ref[...] = x2.reshape(Bb, S, D).astype(o_ref.dtype)


def make_mask_bias(src_mask):
    """(B, 1, S) {0,1} keep-mask -> (B, 1, S) f32 additive bias {0, -1e30}.

    Computed once in the wrapper (layer-invariant), finite sentinel so fully-masked
    rows do not produce NaN in softmax."""
    return jnp.where(src_mask == 0.0, jnp.float32(-1e30), jnp.float32(0.0))


def prepare_encoder_params(params):
    """One-time weight preparation: cast the big matmul weights to bf16 so the
    forward call does not re-convert (and re-write to HBM) every invocation."""
    bf16 = jnp.bfloat16
    out = dict(params)
    for name in ("wqkv", "wo", "w1", "w2"):
        out[name] = params[name].astype(bf16)
    return out


def _pick_vmem_limit():
    """Derive the VMEM limit from the actual chip, leaving ~25% headroom for
    pipeline buffers / internal scratch (v7x: ~48 MiB, v6e/v5e: ~96 MiB)."""
    cap = None
    try:
        info = pltpu.get_tpu_info()
        cap = getattr(info, "vmem_capacity_bytes", None)
    except Exception:
        cap = None
    if not cap:
        cap = 64 * 1024 * 1024  # conservative fallback (v7x per-TC)
    return max(32 * 1024 * 1024, int(cap * 3 // 4))


def encoder_forward(x, mask_bias, params, H, b_blk=None):
    """x: (B, S, D) f32, mask_bias: (B, 1, S) f32 additive bias ({0, -1e30}).
    params: output of prepare_encoder_params (matmul weights already bf16)."""
    B, S, D = x.shape
    N = params["wqkv"].shape[0]
    d_ff = params["w1"].shape[-1]

    if b_blk is None:
        # >= 2 steps on the parallel axis when possible (v7x megacore), while
        # requiring exact divisibility so no garbage tail block is processed.
        b_blk = B // 2 if (B % 2 == 0 and B >= 2) else B
    assert B % b_blk == 0, "batch must be divisible by the batch block"
    B_BLK = b_blk

    def layer_spec(per_layer_shape):
        nd = len(per_layer_shape)
        return pl.BlockSpec((1,) + per_layer_shape,
                            lambda b, n, _nd=nd: (n,) + (0,) * _nd)

    in_specs = [
        pl.BlockSpec((B_BLK, S, D), lambda b, n: (b, 0, 0)),    # x
        pl.BlockSpec((B_BLK, 1, S), lambda b, n: (b, 0, 0)),    # mask bias
        layer_spec((1, D)), layer_spec((1, D)),                 # LN1 gamma, beta
        layer_spec((D, 3 * D)), layer_spec((1, 3 * D)),         # Wqkv, bqkv (fused)
        layer_spec((D, D)), layer_spec((1, D)),                 # Wo, bo
        layer_spec((1, D)), layer_spec((1, D)),                 # LN2 gamma, beta
        layer_spec((D, d_ff)), layer_spec((1, d_ff)),           # W1, b1
        layer_spec((d_ff, D)), layer_spec((1, D)),              # W2, b2
    ]

    kernel = functools.partial(encoder_kernel, H=H)
    return pl.pallas_call(
        kernel,
        out_shape=jax.ShapeDtypeStruct((B, S, D), x.dtype),
        grid_spec=pltpu.PrefetchScalarGridSpec(
            num_scalar_prefetch=0,
            grid=(B // B_BLK, N),               # layer axis innermost (carried output)
            in_specs=in_specs,
            out_specs=pl.BlockSpec((B_BLK, S, D), lambda b, n: (b, 0, 0)),
            scratch_shapes=[
                # concatenated per-head contexts, consumed by the single Wo matmul
                pltpu.VMEM((B_BLK * S, D), jnp.bfloat16),
            ],
        ),
        compiler_params=pltpu.CompilerParams(
            dimension_semantics=("parallel", "arbitrary"),
            vmem_limit_bytes=_pick_vmem_limit(),
        ),
    )(
        x, mask_bias,
        params["g1"], params["b1"],
        params["wqkv"], params["bqkv"],
        params["wo"], params["bo"],
        params["g2"], params["b2"],
        params["w1"], params["fb1"],
        params["w2"], params["fb2"],
    )


def encoder_reference(x, src_mask, p, H):
    """Pure-JAX f32 reference matching the PyTorch forward pass."""
    B, S, D = x.shape
    dk = D // H
    N = p["wqkv"].shape[0]

    def ln(y, g, b, eps=1e-5):
        mu = y.mean(-1, keepdims=True)
        var = ((y - mu) ** 2).mean(-1, keepdims=True)
        return (y - mu) / jnp.sqrt(var + eps) * g + b

    for n in range(N):
        h = ln(x, p["g1"][n], p["b1"][n])
        qkv = h @ p["wqkv"][n] + p["bqkv"][n]
        q, k, v = qkv[..., :D], qkv[..., D:2 * D], qkv[..., 2 * D:]
        q = q.reshape(B, S, H, dk).transpose(0, 2, 1, 3)
        k = k.reshape(B, S, H, dk).transpose(0, 2, 1, 3)
        v = v.reshape(B, S, H, dk).transpose(0, 2, 1, 3)
        s = jnp.einsum("bhqd,bhkd->bhqk", q, k) / math.sqrt(dk)
        s = jnp.where(src_mask[:, None, :, :] == 0.0, -1e30, s)
        a = jax.nn.softmax(s, axis=-1)
        ctx = jnp.einsum("bhqk,bhkd->bhqd", a, v)
        ctx = ctx.transpose(0, 2, 1, 3).reshape(B, S, D)
        x = x + ctx @ p["wo"][n] + p["bo"][n]
        h = ln(x, p["g2"][n], p["b2"][n])
        ff = jnp.maximum(h @ p["w1"][n] + p["fb1"][n], 0.0)
        x = x + ff @ p["w2"][n] + p["fb2"][n]
    return x


def init_encoder_params(key, d_model, d_ff, N):
    """Deterministic synthetic parameters, stacked over the N layers.
    Linear weights stored as (in, out); Q/K/V fused along the output dim."""
    D = d_model
    keys = jax.random.split(key, 9)
    s = 0.05
    return {
        "g1": 1.0 + s * jax.random.normal(keys[0], (N, 1, D), jnp.float32),
        "b1": s * jax.random.normal(keys[1], (N, 1, D), jnp.float32),
        "wqkv": s * jax.random.normal(keys[2], (N, D, 3 * D), jnp.float32),
        "bqkv": s * jax.random.normal(keys[3], (N, 1, 3 * D), jnp.float32),
        "wo": s * jax.random.normal(keys[4], (N, D, D), jnp.float32),
        "bo": s * jax.random.normal(keys[5], (N, 1, D), jnp.float32),
        "g2": 1.0 + s * jax.random.normal(keys[6], (N, 1, D), jnp.float32),
        "b2": jnp.zeros((N, 1, D), jnp.float32),
        "w1": s * jax.random.normal(keys[7], (N, D, d_ff), jnp.float32),
        "fb1": jnp.zeros((N, 1, d_ff), jnp.float32),
        "w2": s * jax.random.normal(keys[8], (N, d_ff, D), jnp.float32),
        "fb2": jnp.zeros((N, 1, D), jnp.float32),
    }


if __name__ == "__main__":
    # Small test config consistent with the module.  (Deployed configs should use
    # D, d_ff as multiples of 128 and S as a multiple of 8 for lane-dense blocks.)
    B, S, d_model, H, d_ff, N = 2, 8, 32, 4, 64, 2

    key = jax.random.PRNGKey(0)
    kx, kp = jax.random.split(key)
    x = jax.random.normal(kx, (B, S, d_model), jnp.float32)

    # src_mask: (B, 1, S); batch 0 fully valid, batch 1 has the last 3 positions masked.
    lengths = jnp.array([S, S - 3])
    src_mask = (jnp.arange(S)[None, None, :] < lengths[:, None, None]).astype(jnp.float32)

    params_f32 = init_encoder_params(kp, d_model, d_ff, N)

    # One-time preparation (hoisted out of the forward path).
    params = prepare_encoder_params(params_f32)
    mask_bias = make_mask_bias(src_mask)

    out = encoder_forward(x, mask_bias, params, H)
    out = jax.block_until_ready(out)

    ref = encoder_reference(x, src_mask, params_f32, H)
    assert out.shape == (B, S, d_model)
    assert bool(jnp.all(jnp.isfinite(out)))
    max_err = float(jnp.max(jnp.abs(out - ref)))
    assert max_err < 5e-2, f"max abs err vs f32 reference: {max_err}"
    print("KERNEL_OK")
</pallas_src>

<mosaic_0001>
module attributes {stable_mosaic.version = 11 : i64} {
  func.func @encoder_kernel(%arg0: i32, %arg1: i32, %arg2: memref<1x8x32xf32, #tpu.memory_space<vmem>>, %arg3: memref<1x1x8xf32, #tpu.memory_space<vmem>>, %arg4: memref<1x1x32xf32, #tpu.memory_space<vmem>>, %arg5: memref<1x1x32xf32, #tpu.memory_space<vmem>>, %arg6: memref<1x32x96xbf16, #tpu.memory_space<vmem>>, %arg7: memref<1x1x96xf32, #tpu.memory_space<vmem>>, %arg8: memref<1x32x32xbf16, #tpu.memory_space<vmem>>, %arg9: memref<1x1x32xf32, #tpu.memory_space<vmem>>, %arg10: memref<1x1x32xf32, #tpu.memory_space<vmem>>, %arg11: memref<1x1x32xf32, #tpu.memory_space<vmem>>, %arg12: memref<1x32x64xbf16, #tpu.memory_space<vmem>>, %arg13: memref<1x1x64xf32, #tpu.memory_space<vmem>>, %arg14: memref<1x64x32xbf16, #tpu.memory_space<vmem>>, %arg15: memref<1x1x32xf32, #tpu.memory_space<vmem>>, %arg16: memref<1x8x32xf32, #tpu.memory_space<vmem>>, %arg17: memref<8x32xbf16, #tpu.memory_space<vmem>>) attributes {dimension_semantics = [#tpu.dimension_semantics<parallel>, #tpu.dimension_semantics<arbitrary>], iteration_bounds = array<i64: 2, 2>, scalar_prefetch = 0 : i64, scratch_operands = 1 : i64, tpu.core_type = #tpu.core_type<tc>, window_params = [{transform_indices = @transform_0, window_bounds = array<i64: 1, 8, 32>}, {transform_indices = @transform_1, window_bounds = array<i64: 1, 1, 8>}, {transform_indices = @transform_2, window_bounds = array<i64: 1, 1, 32>}, {transform_indices = @transform_3, window_bounds = array<i64: 1, 1, 32>}, {transform_indices = @transform_4, window_bounds = array<i64: 1, 32, 96>}, {transform_indices = @transform_5, window_bounds = array<i64: 1, 1, 96>}, {transform_indices = @transform_6, window_bounds = array<i64: 1, 32, 32>}, {transform_indices = @transform_7, window_bounds = array<i64: 1, 1, 32>}, {transform_indices = @transform_8, window_bounds = array<i64: 1, 1, 32>}, {transform_indices = @transform_9, window_bounds = array<i64: 1, 1, 32>}, {transform_indices = @transform_10, window_bounds = array<i64: 1, 32, 64>}, {transform_indices = @transform_11, window_bounds = array<i64: 1, 1, 64>}, {transform_indices = @transform_12, window_bounds = array<i64: 1, 64, 32>}, {transform_indices = @transform_13, window_bounds = array<i64: 1, 1, 32>}, {transform_indices = @transform_14, window_bounds = array<i64: 1, 8, 32>}]} {
    %c0_i32 = arith.constant 0 : i32
    %0 = arith.cmpi eq, %arg1, %c0_i32 : i32
    %1 = arith.extui %0 : i1 to i32
    %c0_i32_0 = arith.constant 0 : i32
    %2 = arith.cmpi ne, %1, %c0_i32_0 : i32
    scf.if %2 {
      %c0_83 = arith.constant 0 : index
      %c0_84 = arith.constant 0 : index
      %c0_85 = arith.constant 0 : index
      %200 = vector.load %arg2[%c0_83, %c0_84, %c0_85] : memref<1x8x32xf32, #tpu.memory_space<vmem>>, vector<1x8x32xf32>
      %c0_86 = arith.constant 0 : index
      %c0_87 = arith.constant 0 : index
      %c0_88 = arith.constant 0 : index
      %201 = vector.load %arg16[%c0_86, %c0_87, %c0_88] : memref<1x8x32xf32, #tpu.memory_space<vmem>>, vector<1x8x32xf32>
      tpu.vector_store %arg16[%c0_86, %c0_87, %c0_88], %200 {strides = array<i32>} : memref<1x8x32xf32, #tpu.memory_space<vmem>>, vector<1x8x32xf32>,
    } else {
    }
    %c0 = arith.constant 0 : index
    %c0_1 = arith.constant 0 : index
    %c0_2 = arith.constant 0 : index
    %3 = vector.load %arg16[%c0, %c0_1, %c0_2] : memref<1x8x32xf32, #tpu.memory_space<vmem>>, vector<1x8x32xf32>
    %4 = vector.shape_cast %3 : vector<1x8x32xf32> to vector<8x32xf32>
    %c0_3 = arith.constant 0 : index
    %c0_4 = arith.constant 0 : index
    %c0_5 = arith.constant 0 : index
    %5 = vector.load %arg3[%c0_3, %c0_4, %c0_5] : memref<1x1x8xf32, #tpu.memory_space<vmem>>, vector<1x1x8xf32>
    %c0_6 = arith.constant 0 : index
    %c0_7 = arith.constant 0 : index
    %c0_8 = arith.constant 0 : index
    %6 = vector.load %arg4[%c0_6, %c0_7, %c0_8] : memref<1x1x32xf32, #tpu.memory_space<vmem>>, vector<1x1x32xf32>
    %7 = vector.shape_cast %6 : vector<1x1x32xf32> to vector<1x32xf32>
    %c0_9 = arith.constant 0 : index
    %c0_10 = arith.constant 0 : index
    %c0_11 = arith.constant 0 : index
    %8 = vector.load %arg5[%c0_9, %c0_10, %c0_11] : memref<1x1x32xf32, #tpu.memory_space<vmem>>, vector<1x1x32xf32>
    %9 = vector.shape_cast %8 : vector<1x1x32xf32> to vector<1x32xf32>
    %cst = arith.constant dense<0.000000e+00> : vector<8xf32>
    %10 = vector.multi_reduction <add>, %4, %cst [1] : vector<8x32xf32> to vector<8xf32>
    %11 = vector.shape_cast %10 : vector<8xf32> to vector<8x1xf32>
    %cst_12 = arith.constant 3.200000e+01 : f32
    %12 = vector.broadcast %cst_12 : f32 to vector<8x1xf32>
    %13 = arith.divf %11, %12 : vector<8x1xf32>
    %14 = vector.broadcast %13 : vector<8x1xf32> to vector<8x32xf32>
    %15 = arith.subf %4, %14 : vector<8x32xf32>
    %16 = arith.mulf %15, %15 : vector<8x32xf32>
    %cst_13 = arith.constant dense<0.000000e+00> : vector<8xf32>
    %17 = vector.multi_reduction <add>, %16, %cst_13 [1] : vector<8x32xf32> to vector<8xf32>
    %18 = vector.shape_cast %17 : vector<8xf32> to vector<8x1xf32>
    %cst_14 = arith.constant 3.200000e+01 : f32
    %19 = vector.broadcast %cst_14 : f32 to vector<8x1xf32>
    %20 = arith.divf %18, %19 : vector<8x1xf32>
    %21 = vector.broadcast %13 : vector<8x1xf32> to vector<8x32xf32>
    %22 = arith.subf %4, %21 : vector<8x32xf32>
    %cst_15 = arith.constant 9.99999974E-6 : f32
    %23 = vector.broadcast %cst_15 : f32 to vector<8x1xf32>
    %24 = arith.addf %20, %23 : vector<8x1xf32>
    %25 = math.rsqrt %24 : vector<8x1xf32>
    %26 = vector.broadcast %25 : vector<8x1xf32> to vector<8x32xf32>
    %27 = arith.mulf %22, %26 : vector<8x32xf32>
    %28 = vector.broadcast %7 : vector<1x32xf32> to vector<8x32xf32>
    %29 = arith.mulf %27, %28 : vector<8x32xf32>
    %30 = vector.broadcast %9 : vector<1x32xf32> to vector<8x32xf32>
    %31 = arith.addf %29, %30 : vector<8x32xf32>
    %32 = arith.truncf %31 : vector<8x32xf32> to vector<8x32xbf16>
    %c0_16 = arith.constant 0 : index
    %c0_17 = arith.constant 0 : index
    %c0_18 = arith.constant 0 : index
    %33 = vector.load %arg6[%c0_16, %c0_17, %c0_18] : memref<1x32x96xbf16, #tpu.memory_space<vmem>>, vector<1x32x96xbf16>
    %34 = vector.shape_cast %33 : vector<1x32x96xbf16> to vector<32x96xbf16>
    %cst_19 = arith.constant dense<0.000000e+00> : vector<8x96xf32>
    %35 = tpu.matmul %32, %34, %cst_19 {dimension_numbers = #tpu.dot_dimension_numbers<[1], [0], [0], [1], [0, 0, 1, 1], [], []>} : vector<8x32xbf16>, vector<32x96xbf16>, vector<8x96xf32> -> vector<8x96xf32>
    %c0_20 = arith.constant 0 : index
    %c0_21 = arith.constant 0 : index
    %c0_22 = arith.constant 0 : index
    %36 = vector.load %arg7[%c0_20, %c0_21, %c0_22] : memref<1x1x96xf32, #tpu.memory_space<vmem>>, vector<1x1x96xf32>
    %37 = vector.shape_cast %36 : vector<1x1x96xf32> to vector<1x96xf32>
    %38 = vector.broadcast %37 : vector<1x96xf32> to vector<8x96xf32>
    %39 = arith.addf %35, %38 : vector<8x96xf32>
    %40 = vector.extract_strided_slice %39 {offsets = [0, 0], sizes = [8, 32], strides = [1, 1]} : vector<8x96xf32> to vector<8x32xf32>
    %cst_23 = arith.constant 0.353553385 : f32
    %41 = vector.broadcast %cst_23 : f32 to vector<8x32xf32>
    %42 = arith.mulf %40, %41 : vector<8x32xf32>
    %43 = vector.shape_cast %42 : vector<8x32xf32> to vector<1x8x32xf32>
    %44 = vector.extract_strided_slice %39 {offsets = [0, 32], sizes = [8, 32], strides = [1, 1]} : vector<8x96xf32> to vector<8x32xf32>
    %45 = vector.shape_cast %44 : vector<8x32xf32> to vector<1x8x32xf32>
    %46 = vector.extract_strided_slice %39 {offsets = [0, 64], sizes = [8, 32], strides = [1, 1]} : vector<8x96xf32> to vector<8x32xf32>
    %47 = vector.shape_cast %46 : vector<8x32xf32> to vector<1x8x32xf32>
    %48 = vector.extract_strided_slice %43 {offsets = [0, 0, 0], sizes = [1, 8, 8], strides = [1, 1, 1]} : vector<1x8x32xf32> to vector<1x8x8xf32>
    %49 = arith.truncf %48 : vector<1x8x8xf32> to vector<1x8x8xbf16>
    %50 = vector.extract_strided_slice %45 {offsets = [0, 0, 0], sizes = [1, 8, 8], strides = [1, 1, 1]} : vector<1x8x32xf32> to vector<1x8x8xf32>
    %51 = arith.truncf %50 : vector<1x8x8xf32> to vector<1x8x8xbf16>
    %52 = vector.extract_strided_slice %47 {offsets = [0, 0, 0], sizes = [1, 8, 8], strides = [1, 1, 1]} : vector<1x8x32xf32> to vector<1x8x8xf32>
    %53 = arith.truncf %52 : vector<1x8x8xf32> to vector<1x8x8xbf16>
    "tpu.trace_start"() <{level = 10 : i32, message = "bqd,bkd->bqk"}> : () -> ()
    %cst_24 = arith.constant dense<0.000000e+00> : vector<1x8x8xf32>
    %54 = tpu.matmul %49, %51, %cst_24 {dimension_numbers = #tpu.dot_dimension_numbers<[2], [2], [1], [1], [0, 0, 0, 1, 1, 1], [0], [0]>} : vector<1x8x8xbf16>, vector<1x8x8xbf16>, vector<1x8x8xf32> -> vector<1x8x8xf32>
    "tpu.trace_stop"() : () -> ()
    %55 = vector.broadcast %5 : vector<1x1x8xf32> to vector<1x8x8xf32>
    %56 = arith.addf %54, %55 : vector<1x8x8xf32>
    %cst_25 = arith.constant dense<0xFF800000> : vector<1x8xf32>
    %57 = vector.multi_reduction <maximumf>, %56, %cst_25 [2] : vector<1x8x8xf32> to vector<1x8xf32>
    %58 = vector.shape_cast %57 : vector<1x8xf32> to vector<1x8x1xf32>
    %59 = vector.broadcast %58 : vector<1x8x1xf32> to vector<1x8x8xf32>
    %60 = arith.subf %56, %59 : vector<1x8x8xf32>
    %61 = math.exp %60 : vector<1x8x8xf32>
    %cst_26 = arith.constant dense<0.000000e+00> : vector<1x8xf32>
    %62 = vector.multi_reduction <add>, %61, %cst_26 [2] : vector<1x8x8xf32> to vector<1x8xf32>
    %63 = vector.shape_cast %62 : vector<1x8xf32> to vector<1x8x1xf32>
    %64 = tpu.reciprocal %63 {approx = true} : vector<1x8x1xf32> -> vector<1x8x1xf32>
    %65 = vector.broadcast %64 : vector<1x8x1xf32> to vector<1x8x8xf32>
    %66 = arith.mulf %61, %65 : vector<1x8x8xf32>
    %67 = arith.truncf %66 : vector<1x8x8xf32> to vector<1x8x8xbf16>
    "tpu.trace_start"() <{level = 10 : i32, message = "bqk,bkd->bqd"}> : () -> ()
    %cst_27 = arith.constant dense<0.000000e+00> : vector<1x8x8xf32>
    %68 = tpu.matmul %67, %53, %cst_27 {dimension_numbers = #tpu.dot_dimension_numbers<[2], [1], [1], [2], [0, 0, 0, 1, 1, 2], [0], [0]>} : vector<1x8x8xbf16>, vector<1x8x8xbf16>, vector<1x8x8xf32> -> vector<1x8x8xf32>
    "tpu.trace_stop"() : () -> ()
    %69 = vector.shape_cast %68 : vector<1x8x8xf32> to vector<8x8xf32>
    %70 = arith.truncf %69 : vector<8x8xf32> to vector<8x8xbf16>
    %c0_28 = arith.constant 0 : index
    %c0_29 = arith.constant 0 : index
    %71 = vector.load %arg17[%c0_28, %c0_29] : memref<8x32xbf16, #tpu.memory_space<vmem>>, vector<8x8xbf16>
    tpu.vector_store %arg17[%c0_28, %c0_29], %70 {strides = array<i32>} : memref<8x32xbf16, #tpu.memory_space<vmem>>, vector<8x8xbf16>,
    %72 = vector.extract_strided_slice %43 {offsets = [0, 0, 8], sizes = [1, 8, 8], strides = [1, 1, 1]} : vector<1x8x32xf32> to vector<1x8x8xf32>
    %73 = arith.truncf %72 : vector<1x8x8xf32> to vector<1x8x8xbf16>
    %74 = vector.extract_strided_slice %45 {offsets = [0, 0, 8], sizes = [1, 8, 8], strides = [1, 1, 1]} : vector<1x8x32xf32> to vector<1x8x8xf32>
    %75 = arith.truncf %74 : vector<1x8x8xf32> to vector<1x8x8xbf16>
    %76 = vector.extract_strided_slice %47 {offsets = [0, 0, 8], sizes = [1, 8, 8], strides = [1, 1, 1]} : vector<1x8x32xf32> to vector<1x8x8xf32>
    %77 = arith.truncf %76 : vector<1x8x8xf32> to vector<1x8x8xbf16>
    "tpu.trace_start"() <{level = 10 : i32, message = "bqd,bkd->bqk"}> : () -> ()
    %cst_30 = arith.constant dense<0.000000e+00> : vector<1x8x8xf32>
    %78 = tpu.matmul %73, %75, %cst_30 {dimension_numbers = #tpu.dot_dimension_numbers<[2], [2], [1], [1], [0, 0, 0, 1, 1, 1], [0], [0]>} : vector<1x8x8xbf16>, vector<1x8x8xbf16>, vector<1x8x8xf32> -> vector<1x8x8xf32>
    "tpu.trace_stop"() : () -> ()
    %79 = vector.broadcast %5 : vector<1x1x8xf32> to vector<1x8x8xf32>
    %80 = arith.addf %78, %79 : vector<1x8x8xf32>
    %cst_31 = arith.constant dense<0xFF800000> : vector<1x8xf32>
    %81 = vector.multi_reduction <maximumf>, %80, %cst_31 [2] : vector<1x8x8xf32> to vector<1x8xf32>
    %82 = vector.shape_cast %81 : vector<1x8xf32> to vector<1x8x1xf32>
    %83 = vector.broadcast %82 : vector<1x8x1xf32> to vector<1x8x8xf32>
    %84 = arith.subf %80, %83 : vector<1x8x8xf32>
    %85 = math.exp %84 : vector<1x8x8xf32>
    %cst_32 = arith.constant dense<0.000000e+00> : vector<1x8xf32>
    %86 = vector.multi_reduction <add>, %85, %cst_32 [2] : vector<1x8x8xf32> to vector<1x8xf32>
    %87 = vector.shape_cast %86 : vector<1x8xf32> to vector<1x8x1xf32>
    %88 = tpu.reciprocal %87 {approx = true} : vector<1x8x1xf32> -> vector<1x8x1xf32>
    %89 = vector.broadcast %88 : vector<1x8x1xf32> to vector<1x8x8xf32>
    %90 = arith.mulf %85, %89 : vector<1x8x8xf32>
    %91 = arith.truncf %90 : vector<1x8x8xf32> to vector<1x8x8xbf16>
    "tpu.trace_start"() <{level = 10 : i32, message = "bqk,bkd->bqd"}> : () -> ()
    %cst_33 = arith.constant dense<0.000000e+00> : vector<1x8x8xf32>
    %92 = tpu.matmul %91, %77, %cst_33 {dimension_numbers = #tpu.dot_dimension_numbers<[2], [1], [1], [2], [0, 0, 0, 1, 1, 2], [0], [0]>} : vector<1x8x8xbf16>, vector<1x8x8xbf16>, vector<1x8x8xf32> -> vector<1x8x8xf32>
    "tpu.trace_stop"() : () -> ()
    %93 = vector.shape_cast %92 : vector<1x8x8xf32> to vector<8x8xf32>
    %94 = arith.truncf %93 : vector<8x8xf32> to vector<8x8xbf16>
    %c0_34 = arith.constant 0 : index
    %c8 = arith.constant 8 : index
    %95 = vector.load %arg17[%c0_34, %c8] : memref<8x32xbf16, #tpu.memory_space<vmem>>, vector<8x8xbf16>
    tpu.vector_store %arg17[%c0_34, %c8], %94 {strides = array<i32>} : memref<8x32xbf16, #tpu.memory_space<vmem>>, vector<8x8xbf16>,
    %96 = vector.extract_strided_slice %43 {offsets = [0, 0, 16], sizes = [1, 8, 8], strides = [1, 1, 1]} : vector<1x8x32xf32> to vector<1x8x8xf32>
    %97 = arith.truncf %96 : vector<1x8x8xf32> to vector<1x8x8xbf16>
    %98 = vector.extract_strided_slice %45 {offsets = [0, 0, 16], sizes = [1, 8, 8], strides = [1, 1, 1]} : vector<1x8x32xf32> to vector<1x8x8xf32>
    %99 = arith.truncf %98 : vector<1x8x8xf32> to vector<1x8x8xbf16>
    %100 = vector.extract_strided_slice %47 {offsets = [0, 0, 16], sizes = [1, 8, 8], strides = [1, 1, 1]} : vector<1x8x32xf32> to vector<1x8x8xf32>
    %101 = arith.truncf %100 : vector<1x8x8xf32> to vector<1x8x8xbf16>
    "tpu.trace_start"() <{level = 10 : i32, message = "bqd,bkd->bqk"}> : () -> ()
    %cst_35 = arith.constant dense<0.000000e+00> : vector<1x8x8xf32>
    %102 = tpu.matmul %97, %99, %cst_35 {dimension_numbers = #tpu.dot_dimension_numbers<[2], [2], [1], [1], [0, 0, 0, 1, 1, 1], [0], [0]>} : vector<1x8x8xbf16>, vector<1x8x8xbf16>, vector<1x8x8xf32> -> vector<1x8x8xf32>
    "tpu.trace_stop"() : () -> ()
    %103 = vector.broadcast %5 : vector<1x1x8xf32> to vector<1x8x8xf32>
    %104 = arith.addf %102, %103 : vector<1x8x8xf32>
    %cst_36 = arith.constant dense<0xFF800000> : vector<1x8xf32>
    %105 = vector.multi_reduction <maximumf>, %104, %cst_36 [2] : vector<1x8x8xf32> to vector<1x8xf32>
    %106 = vector.shape_cast %105 : vector<1x8xf32> to vector<1x8x1xf32>
    %107 = vector.broadcast %106 : vector<1x8x1xf32> to vector<1x8x8xf32>
    %108 = arith.subf %104, %107 : vector<1x8x8xf32>
    %109 = math.exp %108 : vector<1x8x8xf32>
    %cst_37 = arith.constant dense<0.000000e+00> : vector<1x8xf32>
    %110 = vector.multi_reduction <add>, %109, %cst_37 [2] : vector<1x8x8xf32> to vector<1x8xf32>
    %111 = vector.shape_cast %110 : vector<1x8xf32> to vector<1x8x1xf32>
    %112 = tpu.reciprocal %111 {approx = true} : vector<1x8x1xf32> -> vector<1x8x1xf32>
    %113 = vector.broadcast %112 : vector<1x8x1xf32> to vector<1x8x8xf32>
    %114 = arith.mulf %109, %113 : vector<1x8x8xf32>
    %115 = arith.truncf %114 : vector<1x8x8xf32> to vector<1x8x8xbf16>
    "tpu.trace_start"() <{level = 10 : i32, message = "bqk,bkd->bqd"}> : () -> ()
    %cst_38 = arith.constant dense<0.000000e+00> : vector<1x8x8xf32>
    %116 = tpu.matmul %115, %101, %cst_38 {dimension_numbers = #tpu.dot_dimension_numbers<[2], [1], [1], [2], [0, 0, 0, 1, 1, 2], [0], [0]>} : vector<1x8x8xbf16>, vector<1x8x8xbf16>, vector<1x8x8xf32> -> vector<1x8x8xf32>
    "tpu.trace_stop"() : () -> ()
    %117 = vector.shape_cast %116 : vector<1x8x8xf32> to vector<8x8xf32>
    %118 = arith.truncf %117 : vector<8x8xf32> to vector<8x8xbf16>
    %c0_39 = arith.constant 0 : index
    %c16 = arith.constant 16 : index
    %119 = vector.load %arg17[%c0_39, %c16] : memref<8x32xbf16, #tpu.memory_space<vmem>>, vector<8x8xbf16>
    tpu.vector_store %arg17[%c0_39, %c16], %118 {strides = array<i32>} : memref<8x32xbf16, #tpu.memory_space<vmem>>, vector<8x8xbf16>,
    %120 = vector.extract_strided_slice %43 {offsets = [0, 0, 24], sizes = [1, 8, 8], strides = [1, 1, 1]} : vector<1x8x32xf32> to vector<1x8x8xf32>
    %121 = arith.truncf %120 : vector<1x8x8xf32> to vector<1x8x8xbf16>
    %122 = vector.extract_strided_slice %45 {offsets = [0, 0, 24], sizes = [1, 8, 8], strides = [1, 1, 1]} : vector<1x8x32xf32> to vector<1x8x8xf32>
    %123 = arith.truncf %122 : vector<1x8x8xf32> to vector<1x8x8xbf16>
    %124 = vector.extract_strided_slice %47 {offsets = [0, 0, 24], sizes = [1, 8, 8], strides = [1, 1, 1]} : vector<1x8x32xf32> to vector<1x8x8xf32>
    %125 = arith.truncf %124 : vector<1x8x8xf32> to vector<1x8x8xbf16>
    "tpu.trace_start"() <{level = 10 : i32, message = "bqd,bkd->bqk"}> : () -> ()
    %cst_40 = arith.constant dense<0.000000e+00> : vector<1x8x8xf32>
    %126 = tpu.matmul %121, %123, %cst_40 {dimension_numbers = #tpu.dot_dimension_numbers<[2], [2], [1], [1], [0, 0, 0, 1, 1, 1], [0], [0]>} : vector<1x8x8xbf16>, vector<1x8x8xbf16>, vector<1x8x8xf32> -> vector<1x8x8xf32>
    "tpu.trace_stop"() : () -> ()
    %127 = vector.broadcast %5 : vector<1x1x8xf32> to vector<1x8x8xf32>
    %128 = arith.addf %126, %127 : vector<1x8x8xf32>
    %cst_41 = arith.constant dense<0xFF800000> : vector<1x8xf32>
    %129 = vector.multi_reduction <maximumf>, %128, %cst_41 [2] : vector<1x8x8xf32> to vector<1x8xf32>
    %130 = vector.shape_cast %129 : vector<1x8xf32> to vector<1x8x1xf32>
    %131 = vector.broadcast %130 : vector<1x8x1xf32> to vector<1x8x8xf32>
    %132 = arith.subf %128, %131 : vector<1x8x8xf32>
    %133 = math.exp %132 : vector<1x8x8xf32>
    %cst_42 = arith.constant dense<0.000000e+00> : vector<1x8xf32>
    %134 = vector.multi_reduction <add>, %133, %cst_42 [2] : vector<1x8x8xf32> to vector<1x8xf32>
    %135 = vector.shape_cast %134 : vector<1x8xf32> to vector<1x8x1xf32>
    %136 = tpu.reciprocal %135 {approx = true} : vector<1x8x1xf32> -> vector<1x8x1xf32>
    %137 = vector.broadcast %136 : vector<1x8x1xf32> to vector<1x8x8xf32>
    %138 = arith.mulf %133, %137 : vector<1x8x8xf32>
    %139 = arith.truncf %138 : vector<1x8x8xf32> to vector<1x8x8xbf16>
    "tpu.trace_start"() <{level = 10 : i32, message = "bqk,bkd->bqd"}> : () -> ()
    %cst_43 = arith.constant dense<0.000000e+00> : vector<1x8x8xf32>
    %140 = tpu.matmul %139, %125, %cst_43 {dimension_numbers = #tpu.dot_dimension_numbers<[2], [1], [1], [2], [0, 0, 0, 1, 1, 2], [0], [0]>} : vector<1x8x8xbf16>, vector<1x8x8xbf16>, vector<1x8x8xf32> -> vector<1x8x8xf32>
    "tpu.trace_stop"() : () -> ()
    %141 = vector.shape_cast %140 : vector<1x8x8xf32> to vector<8x8xf32>
    %142 = arith.truncf %141 : vector<8x8xf32> to vector<8x8xbf16>
    %c0_44 = arith.constant 0 : index
    %c24 = arith.constant 24 : index
    %143 = vector.load %arg17[%c0_44, %c24] : memref<8x32xbf16, #tpu.memory_space<vmem>>, vector<8x8xbf16>
    tpu.vector_store %arg17[%c0_44, %c24], %142 {strides = array<i32>} : memref<8x32xbf16, #tpu.memory_space<vmem>>, vector<8x8xbf16>,
    %c0_45 = arith.constant 0 : index
    %c0_46 = arith.constant 0 : index
    %144 = vector.load %arg17[%c0_45, %c0_46] : memref<8x32xbf16, #tpu.memory_space<vmem>>, vector<8x32xbf16>
    %c0_47 = arith.constant 0 : index
    %c0_48 = arith.constant 0 : index
    %c0_49 = arith.constant 0 : index
    %145 = vector.load %arg8[%c0_47, %c0_48, %c0_49] : memref<1x32x32xbf16, #tpu.memory_space<vmem>>, vector<1x32x32xbf16>
    %146 = vector.shape_cast %145 : vector<1x32x32xbf16> to vector<32x32xbf16>
    %cst_50 = arith.constant dense<0.000000e+00> : vector<8x32xf32>
    %147 = tpu.matmul %144, %146, %cst_50 {dimension_numbers = #tpu.dot_dimension_numbers<[1], [0], [0], [1], [0, 0, 1, 1], [], []>} : vector<8x32xbf16>, vector<32x32xbf16>, vector<8x32xf32> -> vector<8x32xf32>
    %148 = arith.addf %4, %147 : vector<8x32xf32>
    %c0_51 = arith.constant 0 : index
    %c0_52 = arith.constant 0 : index
    %c0_53 = arith.constant 0 : index
    %149 = vector.load %arg9[%c0_51, %c0_52, %c0_53] : memref<1x1x32xf32, #tpu.memory_space<vmem>>, vector<1x1x32xf32>
    %150 = vector.shape_cast %149 : vector<1x1x32xf32> to vector<1x32xf32>
    %151 = vector.broadcast %150 : vector<1x32xf32> to vector<8x32xf32>
    %152 = arith.addf %148, %151 : vector<8x32xf32>
    %c0_54 = arith.constant 0 : index
    %c0_55 = arith.constant 0 : index
    %c0_56 = arith.constant 0 : index
    %153 = vector.load %arg10[%c0_54, %c0_55, %c0_56] : memref<1x1x32xf32, #tpu.memory_space<vmem>>, vector<1x1x32xf32>
    %154 = vector.shape_cast %153 : vector<1x1x32xf32> to vector<1x32xf32>
    %c0_57 = arith.constant 0 : index
    %c0_58 = arith.constant 0 : index
    %c0_59 = arith.constant 0 : index
    %155 = vector.load %arg11[%c0_57, %c0_58, %c0_59] : memref<1x1x32xf32, #tpu.memory_space<vmem>>, vector<1x1x32xf32>
    %156 = vector.shape_cast %155 : vector<1x1x32xf32> to vector<1x32xf32>
    %cst_60 = arith.constant dense<0.000000e+00> : vector<8xf32>
    %157 = vector.multi_reduction <add>, %152, %cst_60 [1] : vector<8x32xf32> to vector<8xf32>
    %158 = vector.shape_cast %157 : vector<8xf32> to vector<8x1xf32>
    %cst_61 = arith.constant 3.200000e+01 : f32
    %159 = vector.broadcast %cst_61 : f32 to vector<8x1xf32>
    %160 = arith.divf %158, %159 : vector<8x1xf32>
    %161 = vector.broadcast %160 : vector<8x1xf32> to vector<8x32xf32>
    %162 = arith.subf %152, %161 : vector<8x32xf32>
    %163 = arith.mulf %162, %162 : vector<8x32xf32>
    %cst_62 = arith.constant dense<0.000000e+00> : vector<8xf32>
    %164 = vector.multi_reduction <add>, %163, %cst_62 [1] : vector<8x32xf32> to vector<8xf32>
    %165 = vector.shape_cast %164 : vector<8xf32> to vector<8x1xf32>
    %cst_63 = arith.constant 3.200000e+01 : f32
    %166 = vector.broadcast %cst_63 : f32 to vector<8x1xf32>
    %167 = arith.divf %165, %166 : vector<8x1xf32>
    %168 = vector.broadcast %160 : vector<8x1xf32> to vector<8x32xf32>
    %169 = arith.subf %152, %168 : vector<8x32xf32>
    %cst_64 = arith.constant 9.99999974E-6 : f32
    %170 = vector.broadcast %cst_64 : f32 to vector<8x1xf32>
    %171 = arith.addf %167, %170 : vector<8x1xf32>
    %172 = math.rsqrt %171 : vector<8x1xf32>
    %173 = vector.broadcast %172 : vector<8x1xf32> to vector<8x32xf32>
    %174 = arith.mulf %169, %173 : vector<8x32xf32>
    %175 = vector.broadcast %154 : vector<1x32xf32> to vector<8x32xf32>
    %176 = arith.mulf %174, %175 : vector<8x32xf32>
    %177 = vector.broadcast %156 : vector<1x32xf32> to vector<8x32xf32>
    %178 = arith.addf %176, %177 : vector<8x32xf32>
    %179 = arith.truncf %178 : vector<8x32xf32> to vector<8x32xbf16>
    %c0_65 = arith.constant 0 : index
    %c0_66 = arith.constant 0 : index
    %c0_67 = arith.constant 0 : index
    %180 = vector.load %arg12[%c0_65, %c0_66, %c0_67] : memref<1x32x64xbf16, #tpu.memory_space<vmem>>, vector<1x32x64xbf16>
    %181 = vector.shape_cast %180 : vector<1x32x64xbf16> to vector<32x64xbf16>
    %cst_68 = arith.constant dense<0.000000e+00> : vector<8x64xf32>
    %182 = tpu.matmul %179, %181, %cst_68 {dimension_numbers = #tpu.dot_dimension_numbers<[1], [0], [0], [1], [0, 0, 1, 1], [], []>} : vector<8x32xbf16>, vector<32x64xbf16>, vector<8x64xf32> -> vector<8x64xf32>
    %c0_69 = arith.constant 0 : index
    %c0_70 = arith.constant 0 : index
    %c0_71 = arith.constant 0 : index
    %183 = vector.load %arg13[%c0_69, %c0_70, %c0_71] : memref<1x1x64xf32, #tpu.memory_space<vmem>>, vector<1x1x64xf32>
    %184 = vector.shape_cast %183 : vector<1x1x64xf32> to vector<1x64xf32>
    %185 = vector.broadcast %184 : vector<1x64xf32> to vector<8x64xf32>
    %186 = arith.addf %182, %185 : vector<8x64xf32>
    %cst_72 = arith.constant 0.000000e+00 : f32
    %187 = vector.broadcast %cst_72 : f32 to vector<8x64xf32>
    %188 = arith.maximumf %186, %187 : vector<8x64xf32>
    %189 = arith.truncf %188 : vector<8x64xf32> to vector<8x64xbf16>
    %c0_73 = arith.constant 0 : index
    %c0_74 = arith.constant 0 : index
    %c0_75 = arith.constant 0 : index
    %190 = vector.load %arg14[%c0_73, %c0_74, %c0_75] : memref<1x64x32xbf16, #tpu.memory_space<vmem>>, vector<1x64x32xbf16>
    %191 = vector.shape_cast %190 : vector<1x64x32xbf16> to vector<64x32xbf16>
    %cst_76 = arith.constant dense<0.000000e+00> : vector<8x32xf32>
    %192 = tpu.matmul %189, %191, %cst_76 {dimension_numbers = #tpu.dot_dimension_numbers<[1], [0], [0], [1], [0, 0, 1, 1], [], []>} : vector<8x64xbf16>, vector<64x32xbf16>, vector<8x32xf32> -> vector<8x32xf32>
    %c0_77 = arith.constant 0 : index
    %c0_78 = arith.constant 0 : index
    %c0_79 = arith.constant 0 : index
    %193 = vector.load %arg15[%c0_77, %c0_78, %c0_79] : memref<1x1x32xf32, #tpu.memory_space<vmem>>, vector<1x1x32xf32>
    %194 = vector.shape_cast %193 : vector<1x1x32xf32> to vector<1x32xf32>
    %195 = vector.broadcast %194 : vector<1x32xf32> to vector<8x32xf32>
    %196 = arith.addf %192, %195 : vector<8x32xf32>
    %197 = arith.addf %152, %196 : vector<8x32xf32>
    %198 = vector.shape_cast %197 : vector<8x32xf32> to vector<1x8x32xf32>
    %c0_80 = arith.constant 0 : index
    %c0_81 = arith.constant 0 : index
    %c0_82 = arith.constant 0 : index
    %199 = vector.load %arg16[%c0_80, %c0_81, %c0_82] : memref<1x8x32xf32, #tpu.memory_space<vmem>>, vector<1x8x32xf32>
    tpu.vector_store %arg16[%c0_80, %c0_81, %c0_82], %198 {strides = array<i32>} : memref<1x8x32xf32, #tpu.memory_space<vmem>>, vector<1x8x32xf32>,
    return
  }
  func.func @transform_0(%arg0: i32, %arg1: i32) -> (i32, i32, i32) {
    %c0_i32 = arith.constant 0 : i32
    %c0_i32_0 = arith.constant 0 : i32
    %c0_i32_1 = arith.constant 0 : i32
    return %arg0, %c0_i32, %c0_i32_0 : i32, i32, i32
  }
  func.func @transform_1(%arg0: i32, %arg1: i32) -> (i32, i32, i32) {
    %c0_i32 = arith.constant 0 : i32
    %c0_i32_0 = arith.constant 0 : i32
    %c0_i32_1 = arith.constant 0 : i32
    return %arg0, %c0_i32, %c0_i32_0 : i32, i32, i32
  }
  func.func @transform_2(%arg0: i32, %arg1: i32) -> (i32, i32, i32) {
    %c0_i32 = arith.constant 0 : i32
    %c0_i32_0 = arith.constant 0 : i32
    %c0_i32_1 = arith.constant 0 : i32
    return %arg1, %c0_i32, %c0_i32_0 : i32, i32, i32
  }
  func.func @transform_3(%arg0: i32, %arg1: i32) -> (i32, i32, i32) {
    %c0_i32 = arith.constant 0 : i32
    %c0_i32_0 = arith.constant 0 : i32
    %c0_i32_1 = arith.constant 0 : i32
    return %arg1, %c0_i32, %c0_i32_0 : i32, i32, i32
  }
  func.func @transform_4(%arg0: i32, %arg1: i32) -> (i32, i32, i32) {
    %c0_i32 = arith.constant 0 : i32
    %c0_i32_0 = arith.constant 0 : i32
    %c0_i32_1 = arith.constant 0 : i32
    return %arg1, %c0_i32, %c0_i32_0 : i32, i32, i32
  }
  func.func @transform_5(%arg0: i32, %arg1: i32) -> (i32, i32, i32) {
    %c0_i32 = arith.constant 0 : i32
    %c0_i32_0 = arith.constant 0 : i32
    %c0_i32_1 = arith.constant 0 : i32
    return %arg1, %c0_i32, %c0_i32_0 : i32, i32, i32
  }
  func.func @transform_6(%arg0: i32, %arg1: i32) -> (i32, i32, i32) {
    %c0_i32 = arith.constant 0 : i32
    %c0_i32_0 = arith.constant 0 : i32
    %c0_i32_1 = arith.constant 0 : i32
    return %arg1, %c0_i32, %c0_i32_0 : i32, i32, i32
  }
  func.func @transform_7(%arg0: i32, %arg1: i32) -> (i32, i32, i32) {
    %c0_i32 = arith.constant 0 : i32
    %c0_i32_0 = arith.constant 0 : i32
    %c0_i32_1 = arith.constant 0 : i32
    return %arg1, %c0_i32, %c0_i32_0 : i32, i32, i32
  }
  func.func @transform_8(%arg0: i32, %arg1: i32) -> (i32, i32, i32) {
    %c0_i32 = arith.constant 0 : i32
    %c0_i32_0 = arith.constant 0 : i32
    %c0_i32_1 = arith.constant 0 : i32
    return %arg1, %c0_i32, %c0_i32_0 : i32, i32, i32
  }
  func.func @transform_9(%arg0: i32, %arg1: i32) -> (i32, i32, i32) {
    %c0_i32 = arith.constant 0 : i32
    %c0_i32_0 = arith.constant 0 : i32
    %c0_i32_1 = arith.constant 0 : i32
    return %arg1, %c0_i32, %c0_i32_0 : i32, i32, i32
  }
  func.func @transform_10(%arg0: i32, %arg1: i32) -> (i32, i32, i32) {
    %c0_i32 = arith.constant 0 : i32
    %c0_i32_0 = arith.constant 0 : i32
    %c0_i32_1 = arith.constant 0 : i32
    return %arg1, %c0_i32, %c0_i32_0 : i32, i32, i32
  }
  func.func @transform_11(%arg0: i32, %arg1: i32) -> (i32, i32, i32) {
    %c0_i32 = arith.constant 0 : i32
    %c0_i32_0 = arith.constant 0 : i32
    %c0_i32_1 = arith.constant 0 : i32
    return %arg1, %c0_i32, %c0_i32_0 : i32, i32, i32
  }
  func.func @transform_12(%arg0: i32, %arg1: i32) -> (i32, i32, i32) {
    %c0_i32 = arith.constant 0 : i32
    %c0_i32_0 = arith.constant 0 : i32
    %c0_i32_1 = arith.constant 0 : i32
    return %arg1, %c0_i32, %c0_i32_0 : i32, i32, i32
  }
  func.func @transform_13(%arg0: i32, %arg1: i32) -> (i32, i32, i32) {
    %c0_i32 = arith.constant 0 : i32
    %c0_i32_0 = arith.constant 0 : i32
    %c0_i32_1 = arith.constant 0 : i32
    return %arg1, %c0_i32, %c0_i32_0 : i32, i32, i32
  }
  func.func @transform_14(%arg0: i32, %arg1: i32) -> (i32, i32, i32) {
    %c0_i32 = arith.constant 0 : i32
    %c0_i32_0 = arith.constant 0 : i32
    %c0_i32_1 = arith.constant 0 : i32
    return %arg0, %c0_i32, %c0_i32_0 : i32, i32, i32
  }
}

</mosaic_0001>

<llo_original>
// kernel: tpu_custom_call.1
$region0: #{tpu_custom_call.1}
  #allocation0 [shape = 'u32[]', space=smem, size = 0x4, offset = 0x4, fixed_abs, tag = 'smem constant byte address 0x4 - core index']
  #allocation1 [shape = 'u32[144,128]{1,0:T(1,128)}', space=vmem, size = 0x12000, scoped, tag = 'internal scratch']
  #allocation2 [shape = 'bf16[8,32]{1,0:T(8,128)(2,1)}', space=vmem, size = 0x800, scoped, tag = 'scratch operand']
  %s0 = inlined_call_operand.hbm [shape: f32[2,8,32], index: 0, kind: input, shape index: {}]
  %s1 = inlined_call_operand.hbm [shape: f32[2,1,8], index: 1, kind: input, shape index: {}]
  %s2 = inlined_call_operand.vmem [shape: f32[2,1,32], index: 2, kind: input, shape index: {}]
  %s3 = inlined_call_operand.vmem [shape: f32[2,1,32], index: 3, kind: input, shape index: {}]
  %s4 = inlined_call_operand.vmem [shape: bf16[2,32,96], index: 4, kind: input, shape index: {}]
  %s5 = inlined_call_operand.vmem [shape: f32[2,1,96], index: 5, kind: input, shape index: {}]
  %s6 = inlined_call_operand.vmem [shape: bf16[2,32,32], index: 6, kind: input, shape index: {}]
  %s7 = inlined_call_operand.vmem [shape: f32[2,1,32], index: 7, kind: input, shape index: {}]
  %s8 = inlined_call_operand.vmem [shape: f32[2,1,32], index: 8, kind: input, shape index: {}]
  %s9 = inlined_call_operand.vmem [shape: f32[2,1,32], index: 9, kind: input, shape index: {}]
  %s10 = inlined_call_operand.vmem [shape: bf16[2,32,64], index: 10, kind: input, shape index: {}]
  %s11 = inlined_call_operand.vmem [shape: f32[2,1,64], index: 11, kind: input, shape index: {}]
  %s12 = inlined_call_operand.vmem [shape: bf16[2,64,32], index: 12, kind: input, shape index: {}]
  %s13 = inlined_call_operand.vmem [shape: f32[2,1,32], index: 13, kind: input, shape index: {}]
  %s14 = inlined_call_operand.hbm [shape: f32[2,8,32], index: 14, kind: output, shape index: {}]
  %s15 = sld [smem:[#allocation0]]
  $region101: #{tpu_custom_call.1} parent=0
    _
  %s17 = ssub.s32 1, %s15
  %s18 = scalar_select 0, %s17, %s15
  $region1: #{tpu_custom_call.1} parent=0
    #allocation3 [shape = 'u8[8192]{0}', space=vmem, size = 0x2000, scoped, tag = 'input window, operand 0']
    #allocation4 [shape = 's32[2]{0}', space=sflag, size = 0x8, scoped, tag = 'scoped memory for tpu_custom_call.1']
    #allocation5 [shape = 's32[2]{0}', space=sflag, size = 0x8, scoped, tag = 'scoped memory for tpu_custom_call.1']
    #allocation6 [shape = 'u8[1024]{0}', space=vmem, size = 0x400, scoped, tag = 'input window, operand 1']
    #allocation7 [shape = 's32[2]{0}', space=sflag, size = 0x8, scoped, tag = 'scoped memory for tpu_custom_call.1']
    #allocation8 [shape = 'u8[8192]{0}', space=vmem, size = 0x2000, scoped, tag = 'output window, operand 0']
    %19 = vsyncpa [#allocation4], 0
    %s20 = scalar_lea.sflag [#allocation4], 1
    %21 = vsyncpa %s20, 0
    %22 = vsyncpa [#allocation7], 0
    %s23 = scalar_lea.sflag [#allocation7], 1
    %24 = vsyncpa %s23, 0
    %25 = vsyncpa [#allocation5], 0
    %s26 = scalar_lea.sflag [#allocation5], 1
    %27 = vsyncpa %s26, 0
    loop: start=0, step=1, limit=6
    $region2: #{tpu_custom_call.1} parent=1 // loop_pre_header
      _
    $region3: #{tpu_custom_call.1} parent=1 // loop_header
      %s29 = sphi 0, %s33
      %p30 = scmp.ge.s32.totalorder %s29, 6
      %s36 = sphi 0, %s48
      %s37 = sphi 0, %s44
      %s38 = sphi 0, %s36
      %s39 = sphi 0, %s37
      %s40 = sphi 0, %s38
      %s41 = sphi 0, %s39
      %s51 = sphi 0, %s53
      %s54 = sphi 0, %s51
      %s55 = sphi 0, %s54
      %s71 = sphi 0, %s55
      %s77 = sphi 0, %s79
      %s80 = sphi 0, %s77
      %s81 = sphi 0, %s80
      %s97 = sphi 0, %s81
      %s103 = sphi 0, %s105
      %s106 = sphi 0, %s103
      %s107 = sphi 0, %s106
      %s123 = sphi 0, %s107
      %s129 = sphi 0, %s131
      %s132 = sphi 0, %s129
      %s133 = sphi 0, %s132
      %s149 = sphi 0, %s133
      %s155 = sphi 0, %s157
      %s158 = sphi 0, %s155
      %s159 = sphi 0, %s158
      %s175 = sphi 0, %s159
      %s181 = sphi 0, %s183
      %s184 = sphi 0, %s181
      %s185 = sphi 0, %s184
      %s201 = sphi 0, %s185
      %s207 = sphi 0, %s209
      %s210 = sphi 0, %s207
      %s211 = sphi 0, %s210
      %s227 = sphi 0, %s211
      %s233 = sphi 0, %s235
      %s236 = sphi 0, %s233
      %s237 = sphi 0, %s236
      %s253 = sphi 0, %s237
      %s259 = sphi 0, %s261
      %s262 = sphi 0, %s259
      %s263 = sphi 0, %s262
      %s279 = sphi 0, %s263
      %s285 = sphi 0, %s287
      %s288 = sphi 0, %s285
      %s289 = sphi 0, %s288
      %s305 = sphi 0, %s289
      %s311 = sphi 0, %s313
      %s314 = sphi 0, %s311
      %s315 = sphi 0, %s314
      %s331 = sphi 0, %s315
      %s337 = sphi 0, %s339
      %s340 = sphi 0, %s337
      %s341 = sphi 0, %s340
      %s357 = sphi 0, %s341
      %s363 = sphi 0, %s365
      %s366 = sphi 0, %s363
      %s367 = sphi 0, %s366
      %s383 = sphi 0, %s367
      %s389 = sphi 0, %s391
      %s392 = sphi 0, %s389
      %s393 = sphi 0, %s392
      %s409 = sphi 0, %s393
      %s415 = sphi 0, %s417
      %s418 = sphi 0, %s415
      %s419 = sphi 0, %s418
      %s435 = sphi 0, %s419
    $region4: #{tpu_custom_call.1} parent=1 // loop_header_branch
      %32 = sbr.rel (%p30) target = $region8
    $region5: #{tpu_custom_call.1} parent=1 // loop_body
      %s34 = ssub.s32 %s29, 1
      %s35 = ssub.s32 %s29, 2
      %s42 = sadd.s32 1, %s37
      %p43 = scmp.ge.s32.totalorder %s42, 2
      %s44 = scalar_select %p43, 0, %s42
      %s45 = sadd.s32 1, %s36
      %s46 = scalar_select %p43, %s45, %s36
      %p47 = scmp.ge.s32.totalorder %s46, 2
      %s48 = scalar_select %p47, 0, %s46
      %s49 = ssub.s32 %s36, %s48
      %p50 = scmp.eq.s32.totalorder %s49, 0
      %s52 = sadd.s32 %s51, 1
      %s53 = scalar_select %p50, %s51, %s52
      %p56 = pneg %p50
      %p57 = scmp.eq.s32.totalorder %s29, 3
      %p58 = por %p56, %p57
      %p59 = scmp.ne.s32.totalorder %s51, %s54
      %p60 = scmp.eq.s32.totalorder %s29, 0
      %p61 = por %p59, %p60
      %p62 = scmp.ne.s32.totalorder %s51, %s54
      %p63 = scmp.eq.s32.totalorder %s34, 3
      %p64 = por %p62, %p63
      %p65 = scmp.ne.s32.totalorder %s54, %s55
      %p66 = scmp.eq.s32.totalorder %s34, 0
      %p67 = por %p65, %p66
      %p68 = scmp.ne.s32.totalorder %s54, %s55
      %p69 = scmp.eq.s32.totalorder %s35, 3
      %p70 = por %p68, %p69
      %p72 = scmp.ne.s32.totalorder %s55, %s71
      %p73 = scmp.eq.s32.totalorder %s35, 0
      %p74 = por %p72, %p73
      %s75 = ssub.s32 %s36, %s48
      %p76 = scmp.eq.s32.totalorder %s75, 0
      %s78 = sadd.s32 %s77, 1
      %s79 = scalar_select %p76, %s77, %s78
      %p82 = pneg %p76
      %p83 = scmp.eq.s32.totalorder %s29, 3
      %p84 = por %p82, %p83
      %p85 = scmp.ne.s32.totalorder %s77, %s80
      %p86 = scmp.eq.s32.totalorder %s29, 0
      %p87 = por %p85, %p86
      %p88 = scmp.ne.s32.totalorder %s77, %s80
      %p89 = scmp.eq.s32.totalorder %s34, 3
      %p90 = por %p88, %p89
      %p91 = scmp.ne.s32.totalorder %s80, %s81
      %p92 = scmp.eq.s32.totalorder %s34, 0
      %p93 = por %p91, %p92
      %p94 = scmp.ne.s32.totalorder %s80, %s81
      %p95 = scmp.eq.s32.totalorder %s35, 3
      %p96 = por %p94, %p95
      %p98 = scmp.ne.s32.totalorder %s81, %s97
      %p99 = scmp.eq.s32.totalorder %s35, 0
      %p100 = por %p98, %p99
      %s101 = ssub.s32 %s37, %s44
      %p102 = scmp.eq.s32.totalorder %s101, 0
      %s104 = sadd.s32 %s103, 1
      %s105 = scalar_select %p102, %s103, %s104
      %p108 = pneg %p102
      %p109 = scmp.eq.s32.totalorder %s29, 3
      %p110 = por %p108, %p109
      %p111 = scmp.ne.s32.totalorder %s103, %s106
      %p112 = scmp.eq.s32.totalorder %s29, 0
      %p113 = por %p111, %p112
      %p114 = scmp.ne.s32.totalorder %s103, %s106
      %p115 = scmp.eq.s32.totalorder %s34, 3
      %p116 = por %p114, %p115
      %p117 = scmp.ne.s32.totalorder %s106, %s107
      %p118 = scmp.eq.s32.totalorder %s34, 0
      %p119 = por %p117, %p118
      %p120 = scmp.ne.s32.totalorder %s106, %s107
      %p121 = scmp.eq.s32.totalorder %s35, 3
      %p122 = por %p120, %p121
      %p124 = scmp.ne.s32.totalorder %s107, %s123
      %p125 = scmp.eq.s32.totalorder %s35, 0
      %p126 = por %p124, %p125
      %s127 = ssub.s32 %s37, %s44
      %p128 = scmp.eq.s32.totalorder %s127, 0
      %s130 = sadd.s32 %s129, 1
      %s131 = scalar_select %p128, %s129, %s130
      %p134 = pneg %p128
      %p135 = scmp.eq.s32.totalorder %s29, 3
      %p136 = por %p134, %p135
      %p137 = scmp.ne.s32.totalorder %s129, %s132
      %p138 = scmp.eq.s32.totalorder %s29, 0
      %p139 = por %p137, %p138
      %p140 = scmp.ne.s32.totalorder %s129, %s132
      %p141 = scmp.eq.s32.totalorder %s34, 3
      %p142 = por %p140, %p141
      %p143 = scmp.ne.s32.totalorder %s132, %s133
      %p144 = scmp.eq.s32.totalorder %s34, 0
      %p145 = por %p143, %p144
      %p146 = scmp.ne.s32.totalorder %s132, %s133
      %p147 = scmp.eq.s32.totalorder %s35, 3
      %p148 = por %p146, %p147
      %p150 = scmp.ne.s32.totalorder %s133, %s149
      %p151 = scmp.eq.s32.totalorder %s35, 0
      %p152 = por %p150, %p151
      %s153 = ssub.s32 %s37, %s44
      %p154 = scmp.eq.s32.totalorder %s153, 0
      %s156 = sadd.s32 %s155, 1
      %s157 = scalar_select %p154, %s155, %s156
      %p160 = pneg %p154
      %p161 = scmp.eq.s32.totalorder %s29, 3
      %p162 = por %p160, %p161
      %p163 = scmp.ne.s32.totalorder %s155, %s158
      %p164 = scmp.eq.s32.totalorder %s29, 0
      %p165 = por %p163, %p164
      %p166 = scmp.ne.s32.totalorder %s155, %s158
      %p167 = scmp.eq.s32.totalorder %s34, 3
      %p168 = por %p166, %p167
      %p169 = scmp.ne.s32.totalorder %s158, %s159
      %p170 = scmp.eq.s32.totalorder %s34, 0
      %p171 = por %p169, %p170
      %p172 = scmp.ne.s32.totalorder %s158, %s159
      %p173 = scmp.eq.s32.totalorder %s35, 3
      %p174 = por %p172, %p173
      %p176 = scmp.ne.s32.totalorder %s159, %s175
      %p177 = scmp.eq.s32.totalorder %s35, 0
      %p178 = por %p176, %p177
      %s179 = ssub.s32 %s37, %s44
      %p180 = scmp.eq.s32.totalorder %s179, 0
      %s182 = sadd.s32 %s181, 1
      %s183 = scalar_select %p180, %s181, %s182
      %p186 = pneg %p180
      %p187 = scmp.eq.s32.totalorder %s29, 3
      %p188 = por %p186, %p187
      %p189 = scmp.ne.s32.totalorder %s181, %s184
      %p190 = scmp.eq.s32.totalorder %s29, 0
      %p191 = por %p189, %p190
      %p192 = scmp.ne.s32.totalorder %s181, %s184
      %p193 = scmp.eq.s32.totalorder %s34, 3
      %p194 = por %p192, %p193
      %p195 = scmp.ne.s32.totalorder %s184, %s185
      %p196 = scmp.eq.s32.totalorder %s34, 0
      %p197 = por %p195, %p196
      %p198 = scmp.ne.s32.totalorder %s184, %s185
      %p199 = scmp.eq.s32.totalorder %s35, 3
      %p200 = por %p198, %p199
      %p202 = scmp.ne.s32.totalorder %s185, %s201
      %p203 = scmp.eq.s32.totalorder %s35, 0
      %p204 = por %p202, %p203
      %s205 = ssub.s32 %s37, %s44
      %p206 = scmp.eq.s32.totalorder %s205, 0
      %s208 = sadd.s32 %s207, 1
      %s209 = scalar_select %p206, %s207, %s208
      %p212 = pneg %p206
      %p213 = scmp.eq.s32.totalorder %s29, 3
      %p214 = por %p212, %p213
      %p215 = scmp.ne.s32.totalorder %s207, %s210
      %p216 = scmp.eq.s32.totalorder %s29, 0
      %p217 = por %p215, %p216
      %p218 = scmp.ne.s32.totalorder %s207, %s210
      %p219 = scmp.eq.s32.totalorder %s34, 3
      %p220 = por %p218, %p219
      %p221 = scmp.ne.s32.totalorder %s210, %s211
      %p222 = scmp.eq.s32.totalorder %s34, 0
      %p223 = por %p221, %p222
      %p224 = scmp.ne.s32.totalorder %s210, %s211
      %p225 = scmp.eq.s32.totalorder %s35, 3
      %p226 = por %p224, %p225
      %p228 = scmp.ne.s32.totalorder %s211, %s227
      %p229 = scmp.eq.s32.totalorder %s35, 0
      %p230 = por %p228, %p229
      %s231 = ssub.s32 %s37, %s44
      %p232 = scmp.eq.s32.totalorder %s231, 0
      %s234 = sadd.s32 %s233, 1
      %s235 = scalar_select %p232, %s233, %s234
      %p238 = pneg %p232
      %p239 = scmp.eq.s32.totalorder %s29, 3
      %p240 = por %p238, %p239
      %p241 = scmp.ne.s32.totalorder %s233, %s236
      %p242 = scmp.eq.s32.totalorder %s29, 0
      %p243 = por %p241, %p242
      %p244 = scmp.ne.s32.totalorder %s233, %s236
      %p245 = scmp.eq.s32.totalorder %s34, 3
      %p246 = por %p244, %p245
      %p247 = scmp.ne.s32.totalorder %s236, %s237
      %p248 = scmp.eq.s32.totalorder %s34, 0
      %p249 = por %p247, %p248
      %p250 = scmp.ne.s32.totalorder %s236, %s237
      %p251 = scmp.eq.s32.totalorder %s35, 3
      %p252 = por %p250, %p251
      %p254 = scmp.ne.s32.totalorder %s237, %s253
      %p255 = scmp.eq.s32.totalorder %s35, 0
      %p256 = por %p254, %p255
      %s257 = ssub.s32 %s37, %s44
      %p258 = scmp.eq.s32.totalorder %s257, 0
      %s260 = sadd.s32 %s259, 1
      %s261 = scalar_select %p258, %s259, %s260
      %p264 = pneg %p258
      %p265 = scmp.eq.s32.totalorder %s29, 3
      %p266 = por %p264, %p265
      %p267 = scmp.ne.s32.totalorder %s259, %s262
      %p268 = scmp.eq.s32.totalorder %s29, 0
      %p269 = por %p267, %p268
      %p270 = scmp.ne.s32.totalorder %s259, %s262
      %p271 = scmp.eq.s32.totalorder %s34, 3
      %p272 = por %p270, %p271
      %p273 = scmp.ne.s32.totalorder %s262, %s263
      %p274 = scmp.eq.s32.totalorder %s34, 0
      %p275 = por %p273, %p274
      %p276 = scmp.ne.s32.totalorder %s262, %s263
      %p277 = scmp.eq.s32.totalorder %s35, 3
      %p278 = por %p276, %p277
      %p280 = scmp.ne.s32.totalorder %s263, %s279
      %p281 = scmp.eq.s32.totalorder %s35, 0
      %p282 = por %p280, %p281
      %s283 = ssub.s32 %s37, %s44
      %p284 = scmp.eq.s32.totalorder %s283, 0
      %s286 = sadd.s32 %s285, 1
      %s287 = scalar_select %p284, %s285, %s286
      %p290 = pneg %p284
      %p291 = scmp.eq.s32.totalorder %s29, 3
      %p292 = por %p290, %p291
      %p293 = scmp.ne.s32.totalorder %s285, %s288
      %p294 = scmp.eq.s32.totalorder %s29, 0
      %p295 = por %p293, %p294
      %p296 = scmp.ne.s32.totalorder %s285, %s288
      %p297 = scmp.eq.s32.totalorder %s34, 3
      %p298 = por %p296, %p297
      %p299 = scmp.ne.s32.totalorder %s288, %s289
      %p300 = scmp.eq.s32.totalorder %s34, 0
      %p301 = por %p299, %p300
      %p302 = scmp.ne.s32.totalorder %s288, %s289
      %p303 = scmp.eq.s32.totalorder %s35, 3
      %p304 = por %p302, %p303
      %p306 = scmp.ne.s32.totalorder %s289, %s305
      %p307 = scmp.eq.s32.totalorder %s35, 0
      %p308 = por %p306, %p307
      %s309 = ssub.s32 %s37, %s44
      %p310 = scmp.eq.s32.totalorder %s309, 0
      %s312 = sadd.s32 %s311, 1
      %s313 = scalar_select %p310, %s311, %s312
      %p316 = pneg %p310
      %p317 = scmp.eq.s32.totalorder %s29, 3
      %p318 = por %p316, %p317
      %p319 = scmp.ne.s32.totalorder %s311, %s314
      %p320 = scmp.eq.s32.totalorder %s29, 0
      %p321 = por %p319, %p320
      %p322 = scmp.ne.s32.totalorder %s311, %s314
      %p323 = scmp.eq.s32.totalorder %s34, 3
      %p324 = por %p322, %p323
      %p325 = scmp.ne.s32.totalorder %s314, %s315
      %p326 = scmp.eq.s32.totalorder %s34, 0
      %p327 = por %p325, %p326
      %p328 = scmp.ne.s32.totalorder %s314, %s315
      %p329 = scmp.eq.s32.totalorder %s35, 3
      %p330 = por %p328, %p329
      %p332 = scmp.ne.s32.totalorder %s315, %s331
      %p333 = scmp.eq.s32.totalorder %s35, 0
      %p334 = por %p332, %p333
      %s335 = ssub.s32 %s37, %s44
      %p336 = scmp.eq.s32.totalorder %s335, 0
      %s338 = sadd.s32 %s337, 1
      %s339 = scalar_select %p336, %s337, %s338
      %p342 = pneg %p336
      %p343 = scmp.eq.s32.totalorder %s29, 3
      %p344 = por %p342, %p343
      %p345 = scmp.ne.s32.totalorder %s337, %s340
      %p346 = scmp.eq.s32.totalorder %s29, 0
      %p347 = por %p345, %p346
      %p348 = scmp.ne.s32.totalorder %s337, %s340
      %p349 = scmp.eq.s32.totalorder %s34, 3
      %p350 = por %p348, %p349
      %p351 = scmp.ne.s32.totalorder %s340, %s341
      %p352 = scmp.eq.s32.totalorder %s34, 0
      %p353 = por %p351, %p352
      %p354 = scmp.ne.s32.totalorder %s340, %s341
      %p355 = scmp.eq.s32.totalorder %s35, 3
      %p356 = por %p354, %p355
      %p358 = scmp.ne.s32.totalorder %s341, %s357
      %p359 = scmp.eq.s32.totalorder %s35, 0
      %p360 = por %p358, %p359
      %s361 = ssub.s32 %s37, %s44
      %p362 = scmp.eq.s32.totalorder %s361, 0
      %s364 = sadd.s32 %s363, 1
      %s365 = scalar_select %p362, %s363, %s364
      %p368 = pneg %p362
      %p369 = scmp.eq.s32.totalorder %s29, 3
      %p370 = por %p368, %p369
      %p371 = scmp.ne.s32.totalorder %s363, %s366
      %p372 = scmp.eq.s32.totalorder %s29, 0
      %p373 = por %p371, %p372
      %p374 = scmp.ne.s32.totalorder %s363, %s366
      %p375 = scmp.eq.s32.totalorder %s34, 3
      %p376 = por %p374, %p375
      %p377 = scmp.ne.s32.totalorder %s366, %s367
      %p378 = scmp.eq.s32.totalorder %s34, 0
      %p379 = por %p377, %p378
      %p380 = scmp.ne.s32.totalorder %s366, %s367
      %p381 = scmp.eq.s32.totalorder %s35, 3
      %p382 = por %p380, %p381
      %p384 = scmp.ne.s32.totalorder %s367, %s383
      %p385 = scmp.eq.s32.totalorder %s35, 0
      %p386 = por %p384, %p385
      %s387 = ssub.s32 %s37, %s44
      %p388 = scmp.eq.s32.totalorder %s387, 0
      %s390 = sadd.s32 %s389, 1
      %s391 = scalar_select %p388, %s389, %s390
      %p394 = pneg %p388
      %p395 = scmp.eq.s32.totalorder %s29, 3
      %p396 = por %p394, %p395
      %p397 = scmp.ne.s32.totalorder %s389, %s392
      %p398 = scmp.eq.s32.totalorder %s29, 0
      %p399 = por %p397, %p398
      %p400 = scmp.ne.s32.totalorder %s389, %s392
      %p401 = scmp.eq.s32.totalorder %s34, 3
      %p402 = por %p400, %p401
      %p403 = scmp.ne.s32.totalorder %s392, %s393
      %p404 = scmp.eq.s32.totalorder %s34, 0
      %p405 = por %p403, %p404
      %p406 = scmp.ne.s32.totalorder %s392, %s393
      %p407 = scmp.eq.s32.totalorder %s35, 3
      %p408 = por %p406, %p407
      %p410 = scmp.ne.s32.totalorder %s393, %s409
      %p411 = scmp.eq.s32.totalorder %s35, 0
      %p412 = por %p410, %p411
      %s413 = ssub.s32 %s36, %s48
      %p414 = scmp.eq.s32.totalorder %s413, 0
      %s416 = sadd.s32 %s415, 1
      %s417 = scalar_select %p414, %s415, %s416
      %p420 = pneg %p414
      %p421 = scmp.eq.s32.totalorder %s29, 3
      %p422 = por %p420, %p421
      %p423 = scmp.ne.s32.totalorder %s415, %s418
      %p424 = scmp.eq.s32.totalorder %s29, 0
      %p425 = por %p423, %p424
      %p426 = scmp.ne.s32.totalorder %s415, %s418
      %p427 = scmp.eq.s32.totalorder %s34, 3
      %p428 = por %p426, %p427
      %p429 = scmp.ne.s32.totalorder %s418, %s419
      %p430 = scmp.eq.s32.totalorder %s34, 0
      %p431 = por %p429, %p430
      %p432 = scmp.ne.s32.totalorder %s418, %s419
      %p433 = scmp.eq.s32.totalorder %s35, 3
      %p434 = por %p432, %p433
      %p436 = scmp.ne.s32.totalorder %s419, %s435
      %p437 = scmp.eq.s32.totalorder %s35, 0
      %p438 = por %p436, %p437
      %p439 = scmp.le.s32.totalorder 1, %s29
      %p440 = scmp.lt.s32.totalorder %s29, 5
      %p441 = pnand %p439, %p440
      %p442 = pneg %p441
      // Predicated region
      $region9: #{tpu_custom_call.1} parent=5 // pred_check
        _
      $region10: #{tpu_custom_call.1} parent=5 // pred_check_branch
        %444 = sbr.rel (%p441) target = $region12
      $region11: #{tpu_custom_call.1} parent=5 // pred_region
        %s445 = ssub.s32 %s29, 1
      $region12: #{tpu_custom_call.1} parent=5 // pred_fallthru
        _
      %p446 = scmp.lt.s32.totalorder %s29, 4
      // Predicated region
      $region13: #{tpu_custom_call.1} parent=5 // pred_check
        %p447 = pneg %p446
      $region14: #{tpu_custom_call.1} parent=5 // pred_check_branch
        %449 = sbr.rel (%p447) target = $region16
      $region15: #{tpu_custom_call.1} parent=5 // pred_region
        // Predicated region
        $region17: #{tpu_custom_call.1} parent=15 // pred_check
          %p450 = pneg %p61
        $region18: #{tpu_custom_call.1} parent=15 // pred_check_branch
          %452 = sbr.rel (%p450) target = $region20
        $region19: #{tpu_custom_call.1} parent=15 // pred_region
          %s453 = sand.u32 %s51, 1
          %s454 = scalar_lea.sflag [#allocation4], %s453
          %s455 = sand.u32 %s51, 1
          %s456 = smul.addr %s455, 8
          %s457 = scalar_lea.vmem [#allocation3], %s456
          %s459 = ssub.s32 128, 128
          %460 = vsyncadd %s454, %s459
          %s461 = smul.addr %s36, 128
          %s462 = scalar_lea.hbm %s0, %s461
          %s464 = sshll.u32 %s457, 4
          %s465 = int_to_ptr.vmem [resolvable:$true] %s464
          %467 = dma.hbm_to_vmem [thread:$0]  %s462, 128, %s465, %s454
        $region20: #{tpu_custom_call.1} parent=15 // pred_fallthru
          _
        // Predicated region
        $region21: #{tpu_custom_call.1} parent=15 // pred_check
          %p468 = pneg %p87
        $region22: #{tpu_custom_call.1} parent=15 // pred_check_branch
          %470 = sbr.rel (%p468) target = $region24
        $region23: #{tpu_custom_call.1} parent=15 // pred_region
          %s471 = sand.u32 %s77, 1
          %s472 = scalar_lea.sflag [#allocation7], %s471
          %s473 = sand.u32 %s77, 1
          %s474 = scalar_lea.vmem [#allocation6], %s473
          %s476 = ssub.s32 16, 16
          %477 = vsyncadd %s472, %s476
          %s478 = smul.addr %s36, 16
          %s479 = scalar_lea.hbm %s1, %s478
          %s481 = sshll.u32 %s474, 4
          %s482 = int_to_ptr.vmem [resolvable:$true] %s481
          %484 = dma.hbm_to_vmem [thread:$0]  %s479, 16, %s482, %s472
        $region24: #{tpu_custom_call.1} parent=15 // pred_fallthru
          _
        // Predicated region
        $region25: #{tpu_custom_call.1} parent=15 // pred_check
          %p485 = pneg %p113
        $region26: #{tpu_custom_call.1} parent=15 // pred_check_branch
          %487 = sbr.rel (%p485) target = $region28
        $region27: #{tpu_custom_call.1} parent=15 // pred_region
          %p488 = scmp.lt.s32.totalorder %s37, 1
          %s489 = scalar_select %p488, %s37, 1
          %s490 = scalar_lea.vmem %s2, %s489
        $region28: #{tpu_custom_call.1} parent=15 // pred_fallthru
          _
        // Predicated region
        $region29: #{tpu_custom_call.1} parent=15 // pred_check
          %p491 = pneg %p139
        $region30: #{tpu_custom_call.1} parent=15 // pred_check_branch
          %493 = sbr.rel (%p491) target = $region32
        $region31: #{tpu_custom_call.1} parent=15 // pred_region
          %p494 = scmp.lt.s32.totalorder %s37, 1
          %s495 = scalar_select %p494, %s37, 1
          %s496 = scalar_lea.vmem %s3, %s495
        $region32: #{tpu_custom_call.1} parent=15 // pred_fallthru
          _
        // Predicated region
        $region33: #{tpu_custom_call.1} parent=15 // pred_check
          %p497 = pneg %p165
        $region34: #{tpu_custom_call.1} parent=15 // pred_check_branch
          %499 = sbr.rel (%p497) target = $region36
        $region35: #{tpu_custom_call.1} parent=15 // pred_region
          %p500 = scmp.lt.s32.totalorder %s37, 1
          %s501 = scalar_select %p500, %s37, 1
          %s502 = smul.addr %s501, 4
          %s503 = smul.addr %s502, 4
          %s504 = scalar_lea.vmem %s4, %s503
        $region36: #{tpu_custom_call.1} parent=15 // pred_fallthru
          _
        // Predicated region
        $region37: #{tpu_custom_call.1} parent=15 // pred_check
          %p505 = pneg %p191
        $region38: #{tpu_custom_call.1} parent=15 // pred_check_branch
          %507 = sbr.rel (%p505) target = $region40
        $region39: #{tpu_custom_call.1} parent=15 // pred_region
          %p508 = scmp.lt.s32.totalorder %s37, 1
          %s509 = scalar_select %p508, %s37, 1
          %s510 = scalar_lea.vmem %s5, %s509
        $region40: #{tpu_custom_call.1} parent=15 // pred_fallthru
          _
        // Predicated region
        $region41: #{tpu_custom_call.1} parent=15 // pred_check
          %p511 = pneg %p217
        $region42: #{tpu_custom_call.1} parent=15 // pred_check_branch
          %513 = sbr.rel (%p511) target = $region44
        $region43: #{tpu_custom_call.1} parent=15 // pred_region
          %p514 = scmp.lt.s32.totalorder %s37, 1
          %s515 = scalar_select %p514, %s37, 1
          %s516 = smul.addr %s515, 4
          %s517 = smul.addr %s516, 4
          %s518 = scalar_lea.vmem %s6, %s517
        $region44: #{tpu_custom_call.1} parent=15 // pred_fallthru
          _
        // Predicated region
        $region45: #{tpu_custom_call.1} parent=15 // pred_check
          %p519 = pneg %p243
        $region46: #{tpu_custom_call.1} parent=15 // pred_check_branch
          %521 = sbr.rel (%p519) target = $region48
        $region47: #{tpu_custom_call.1} parent=15 // pred_region
          %p522 = scmp.lt.s32.totalorder %s37, 1
          %s523 = scalar_select %p522, %s37, 1
          %s524 = scalar_lea.vmem %s7, %s523
        $region48: #{tpu_custom_call.1} parent=15 // pred_fallthru
          _
        // Predicated region
        $region49: #{tpu_custom_call.1} parent=15 // pred_check
          %p525 = pneg %p269
        $region50: #{tpu_custom_call.1} parent=15 // pred_check_branch
          %527 = sbr.rel (%p525) target = $region52
        $region51: #{tpu_custom_call.1} parent=15 // pred_region
          %p528 = scmp.lt.s32.totalorder %s37, 1
          %s529 = scalar_select %p528, %s37, 1
          %s530 = scalar_lea.vmem %s8, %s529
        $region52: #{tpu_custom_call.1} parent=15 // pred_fallthru
          _
        // Predicated region
        $region53: #{tpu_custom_call.1} parent=15 // pred_check
          %p531 = pneg %p295
        $region54: #{tpu_custom_call.1} parent=15 // pred_check_branch
          %533 = sbr.rel (%p531) target = $region56
        $region55: #{tpu_custom_call.1} parent=15 // pred_region
          %p534 = scmp.lt.s32.totalorder %s37, 1
          %s535 = scalar_select %p534, %s37, 1
          %s536 = scalar_lea.vmem %s9, %s535
        $region56: #{tpu_custom_call.1} parent=15 // pred_fallthru
          _
        // Predicated region
        $region57: #{tpu_custom_call.1} parent=15 // pred_check
          %p537 = pneg %p321
        $region58: #{tpu_custom_call.1} parent=15 // pred_check_branch
          %539 = sbr.rel (%p537) target = $region60
        $region59: #{tpu_custom_call.1} parent=15 // pred_region
          %p540 = scmp.lt.s32.totalorder %s37, 1
          %s541 = scalar_select %p540, %s37, 1
          %s542 = smul.addr %s541, 4
          %s543 = smul.addr %s542, 4
          %s544 = scalar_lea.vmem %s10, %s543
        $region60: #{tpu_custom_call.1} parent=15 // pred_fallthru
          _
        // Predicated region
        $region61: #{tpu_custom_call.1} parent=15 // pred_check
          %p545 = pneg %p347
        $region62: #{tpu_custom_call.1} parent=15 // pred_check_branch
          %547 = sbr.rel (%p545) target = $region64
        $region63: #{tpu_custom_call.1} parent=15 // pred_region
          %p548 = scmp.lt.s32.totalorder %s37, 1
          %s549 = scalar_select %p548, %s37, 1
          %s550 = scalar_lea.vmem %s11, %s549
        $region64: #{tpu_custom_call.1} parent=15 // pred_fallthru
          _
        // Predicated region
        $region65: #{tpu_custom_call.1} parent=15 // pred_check
          %p551 = pneg %p373
        $region66: #{tpu_custom_call.1} parent=15 // pred_check_branch
          %553 = sbr.rel (%p551) target = $region68
        $region67: #{tpu_custom_call.1} parent=15 // pred_region
          %p554 = scmp.lt.s32.totalorder %s37, 1
          %s555 = scalar_select %p554, %s37, 1
          %s556 = smul.addr %s555, 8
          %s557 = smul.addr %s556, 4
          %s558 = scalar_lea.vmem %s12, %s557
        $region68: #{tpu_custom_call.1} parent=15 // pred_fallthru
          _
        // Predicated region
        $region69: #{tpu_custom_call.1} parent=15 // pred_check
          %p559 = pneg %p399
        $region70: #{tpu_custom_call.1} parent=15 // pred_check_branch
          %561 = sbr.rel (%p559) target = $region72
        $region71: #{tpu_custom_call.1} parent=15 // pred_region
          %p562 = scmp.lt.s32.totalorder %s37, 1
          %s563 = scalar_select %p562, %s37, 1
          %s564 = scalar_lea.vmem %s13, %s563
        $region72: #{tpu_custom_call.1} parent=15 // pred_fallthru
          _
      $region16: #{tpu_custom_call.1} parent=5 // pred_fallthru
        _
      %p565 = scmp.le.s32.totalorder 1, %s29
      %p566 = scmp.lt.s32.totalorder %s29, 5
      %p567 = pnand %p565, %p566
      %p568 = pneg %p567
      // Predicated region
      $region73: #{tpu_custom_call.1} parent=5 // pred_check
        _
      $region74: #{tpu_custom_call.1} parent=5 // pred_check_branch
        %570 = sbr.rel (%p567) target = $region76
      $region75: #{tpu_custom_call.1} parent=5 // pred_region
        %s571 = ssub.s32 %s29, 1
        %s572 = sand.u32 %s54, 1
        %s573 = scalar_lea.sflag [#allocation4], %s572
        %s574 = sand.u32 %s54, 1
        %s575 = smul.addr %s574, 8
        %s576 = scalar_lea.vmem [#allocation3], %s575
        // Predicated region
        $region77: #{tpu_custom_call.1} parent=75 // pred_check
          %p577 = pneg %p67
        $region78: #{tpu_custom_call.1} parent=75 // pred_check_branch
          %579 = sbr.rel (%p577) target = $region80
        $region79: #{tpu_custom_call.1} parent=75 // pred_region
          %580 = dma.done %s573, 128
        $region80: #{tpu_custom_call.1} parent=75 // pred_fallthru
          _
        %s581 = sand.u32 %s80, 1
        %s582 = scalar_lea.sflag [#allocation7], %s581
        %s583 = sand.u32 %s80, 1
        %s584 = scalar_lea.vmem [#allocation6], %s583
        // Predicated region
        $region81: #{tpu_custom_call.1} parent=75 // pred_check
          %p585 = pneg %p93
        $region82: #{tpu_custom_call.1} parent=75 // pred_check_branch
          %587 = sbr.rel (%p585) target = $region84
        $region83: #{tpu_custom_call.1} parent=75 // pred_region
          %588 = dma.done %s582, 16
        $region84: #{tpu_custom_call.1} parent=75 // pred_fallthru
          _
        %s589 = sand.u32 %s54, 1
        %s590 = scalar_lea.sflag [#allocation4], %s589
        %s591 = sand.u32 %s54, 1
        %s592 = smul.addr %s591, 8
        %s593 = scalar_lea.vmem [#allocation3], %s592
        %p594 = pneg %p67
        %p595 = pneg %p64
        %s596 = sand.u32 %s80, 1
        %s597 = scalar_lea.sflag [#allocation7], %s596
        %s598 = sand.u32 %s80, 1
        %s599 = scalar_lea.vmem [#allocation6], %s598
        %p600 = pneg %p93
        %p601 = pneg %p90
        %p602 = scmp.lt.s32.totalorder %s39, 1
        %s603 = scalar_select %p602, %s39, 1
        %s604 = scalar_lea.vmem %s2, %s603
        %p605 = pneg %p119
        %p606 = pneg %p116
        %p607 = scmp.lt.s32.totalorder %s39, 1
        %s608 = scalar_select %p607, %s39, 1
        %s609 = scalar_lea.vmem %s3, %s608
        %p610 = pneg %p145
        %p611 = pneg %p142
        %p612 = scmp.lt.s32.totalorder %s39, 1
        %s613 = scalar_select %p612, %s39, 1
        %s614 = smul.addr %s613, 4
        %s615 = smul.addr %s614, 4
        %s616 = scalar_lea.vmem %s4, %s615
        %p617 = pneg %p171
        %p618 = pneg %p168
        %p619 = scmp.lt.s32.totalorder %s39, 1
        %s620 = scalar_select %p619, %s39, 1
        %s621 = scalar_lea.vmem %s5, %s620
        %p622 = pneg %p197
        %p623 = pneg %p194
        %p624 = scmp.lt.s32.totalorder %s39, 1
        %s625 = scalar_select %p624, %s39, 1
        %s626 = smul.addr %s625, 4
        %s627 = smul.addr %s626, 4
        %s628 = scalar_lea.vmem %s6, %s627
        %p629 = pneg %p223
        %p630 = pneg %p220
        %p631 = scmp.lt.s32.totalorder %s39, 1
        %s632 = scalar_select %p631, %s39, 1
        %s633 = scalar_lea.vmem %s7, %s632
        %p634 = pneg %p249
        %p635 = pneg %p246
        %p636 = scmp.lt.s32.totalorder %s39, 1
        %s637 = scalar_select %p636, %s39, 1
        %s638 = scalar_lea.vmem %s8, %s637
        %p639 = pneg %p275
        %p640 = pneg %p272
        %p641 = scmp.lt.s32.totalorder %s39, 1
        %s642 = scalar_select %p641, %s39, 1
        %s643 = scalar_lea.vmem %s9, %s642
        %p644 = pneg %p301
        %p645 = pneg %p298
        %p646 = scmp.lt.s32.totalorder %s39, 1
        %s647 = scalar_select %p646, %s39, 1
        %s648 = smul.addr %s647, 4
        %s649 = smul.addr %s648, 4
        %s650 = scalar_lea.vmem %s10, %s649
        %p651 = pneg %p327
        %p652 = pneg %p324
        %p653 = scmp.lt.s32.totalorder %s39, 1
        %s654 = scalar_select %p653, %s39, 1
        %s655 = scalar_lea.vmem %s11, %s654
        %p656 = pneg %p353
        %p657 = pneg %p350
        %p658 = scmp.lt.s32.totalorder %s39, 1
        %s659 = scalar_select %p658, %s39, 1
        %s660 = smul.addr %s659, 8
        %s661 = smul.addr %s660, 4
        %s662 = scalar_lea.vmem %s12, %s661
        %p663 = pneg %p379
        %p664 = pneg %p376
        %p665 = scmp.lt.s32.totalorder %s39, 1
        %s666 = scalar_select %p665, %s39, 1
        %s667 = scalar_lea.vmem %s13, %s666
        %p668 = pneg %p405
        %p669 = pneg %p402
        %p670 = pneg %p431
        %p671 = pneg %p428
        %s672 = sand.u32 %s418, 1
        %s673 = scalar_lea.sflag [#allocation5], %s672
        %s674 = sand.u32 %s418, 1
        %s675 = smul.addr %s674, 8
        %s676 = scalar_lea.vmem [#allocation8], %s675
        %p677 = scmp.lt.s32.totalorder %s39, 1
        %s678 = scalar_select %p677, %s39, 1
        %s679 = scalar_lea.vmem %s2, %s678
        %p680 = scmp.lt.s32.totalorder %s39, 1
        %s681 = scalar_select %p680, %s39, 1
        %s682 = scalar_lea.vmem %s3, %s681
        %p683 = scmp.lt.s32.totalorder %s39, 1
        %s684 = scalar_select %p683, %s39, 1
        %s685 = smul.addr %s684, 4
        %s686 = smul.addr %s685, 4
        %s687 = scalar_lea.vmem %s4, %s686
        %p688 = scmp.lt.s32.totalorder %s39, 1
        %s689 = scalar_select %p688, %s39, 1
        %s690 = scalar_lea.vmem %s5, %s689
        %p691 = scmp.lt.s32.totalorder %s39, 1
        %s692 = scalar_select %p691, %s39, 1
        %s693 = smul.addr %s692, 4
        %s694 = smul.addr %s693, 4
        %s695 = scalar_lea.vmem %s6, %s694
        %p696 = scmp.lt.s32.totalorder %s39, 1
        %s697 = scalar_select %p696, %s39, 1
        %s698 = scalar_lea.vmem %s7, %s697
        %p699 = scmp.lt.s32.totalorder %s39, 1
        %s700 = scalar_select %p699, %s39, 1
        %s701 = scalar_lea.vmem %s8, %s700
        %p702 = scmp.lt.s32.totalorder %s39, 1
        %s703 = scalar_select %p702, %s39, 1
        %s704 = scalar_lea.vmem %s9, %s703
        %p705 = scmp.lt.s32.totalorder %s39, 1
        %s706 = scalar_select %p705, %s39, 1
        %s707 = smul.addr %s706, 4
        %s708 = smul.addr %s707, 4
        %s709 = scalar_lea.vmem %s10, %s708
        %p710 = scmp.lt.s32.totalorder %s39, 1
        %s711 = scalar_select %p710, %s39, 1
        %s712 = scalar_lea.vmem %s11, %s711
        %p713 = scmp.lt.s32.totalorder %s39, 1
        %s714 = scalar_select %p713, %s39, 1
        %s715 = smul.addr %s714, 8
        %s716 = smul.addr %s715, 4
        %s717 = scalar_lea.vmem %s12, %s716
        %p718 = scmp.lt.s32.totalorder %s39, 1
        %s719 = scalar_select %p718, %s39, 1
        %s720 = scalar_lea.vmem %s13, %s719
        %p722 = scmp.eq.s32.totalorder %s39, 0
        // Predicated region
        $region85: #{tpu_custom_call.1} parent=75 // pred_check
          %p723 = pneg %p722
        $region86: #{tpu_custom_call.1} parent=75 // pred_check_branch
          %725 = sbr.rel (%p723) target = $region88
        $region87: #{tpu_custom_call.1} parent=75 // pred_region
          %v726 = vld [vmem:[%s576] sm:$0xff]
          %vm727 = vcmask 261120
          %728 = vst.msk [vmem:[%s676] sm:$0xff] %vm727, %v726
        $region88: #{tpu_custom_call.1} parent=75 // pred_fallthru
          _
        %v729 = vld [vmem:[%s676] sm:$0xff]
        %v730 = vld [vmem:[%s584] sm:$0x1]
        %v731 = vld [vmem:[%s679] sm:$0x1]
        %v732 = vld [vmem:[%s682] sm:$0x1]
        %vm733 = vcmask 261120
        %v734 = vsel %vm733, %v729, 0.0
        %735 = vadd.xlane.f32.xlu0 %v734
        %v736 = vpop.xlane.xlu0 %735
        %v737 = vrcp.pop 32.0
        %v738 = vmul.f32 %v736, %v737
        %v739 = vsub.f32 %v729, %v738
        %v740 = vmul.f32 %v739, %v739
        %v741 = vsel %vm733, %v740, 0.0
        %742 = vadd.xlane.f32.xlu0 %v741
        %v743 = vpop.xlane.xlu0 %742
        %v744 = vmul.f32 %v743, %v737
        %v745 = vadd.f32 %v744, 1e-05
        %v746 = vrsqrt.pop %v745
        %v747 = vmul.f32 %v739, %v746
        %v749 = vlaneseq
        %v750 = vshrl.u32 %v749, 7
        %v751 = vsub.s32 0, %v750
        %v752 = vrot.slane %v731, %v751
        %v754 = vmul.f32 %v747, %v752
        %v756 = vlaneseq
        %v757 = vshrl.u32 %v756, 7
        %v758 = vsub.s32 0, %v757
        %v759 = vrot.slane %v732, %v758
        %v761 = vadd.f32 %v754, %v759
        %v762 = vpack.c.bf16 %v761, %v761
        %v763 = vld [vmem:[%s687] sm:$0xf]
        %v764 = vld [vmem:[%s687 + $0x4] sm:$0xf]
        %v765 = vld [vmem:[%s687 + $0x8] sm:$0xf]
        %v766 = vld [vmem:[%s687 + $0xc] sm:$0xf]
        %v767 = vld [vmem:[%s690] sm:$0x1]
        %v769 = vlaneseq
        %v770 = vshrl.u32 %v769, 7
        %v771 = vsub.s32 0, %v770
        %v772 = vrot.slane %v767, %v771
        %v778 = vunpack.c.l.b16 %v763
        %v779 = vunpack.c.l.b16 %v764
        %v780 = vunpack.c.l.b16 %v765
        %v781 = vunpack.c.l.b16 %v766
        %v782 = vpack.c.b16 %v779, %v778
        %v783 = vpack.c.b16 %v781, %v780
        %v787 = vsel %vm733, %v762, 0
        %789 = vmatprep.subr.bf16.mxu0 0
        %790 = vmatpush1.bf16.msra.mxu0 0
        %791 = vmatprep.subr.bf16.mxu0 0
        %792 = vmatpush1.bf16.msra.mxu0 0
        %793 = vmatprep.subr.bf16.mxu0 0
        %794 = vmatpush1.bf16.msra.mxu0 0
        %795 = vmatprep.subr.bf16.mxu0 0
        %796 = vmatpush1.bf16.msra.mxu0 0
        %797 = vmatprep.subr.bf16.mxu0 0
        %798 = vmatpush1.bf16.msra.mxu0 0
        %799 = vmatprep.subr.bf16.mxu0 0
        %800 = vmatpush1.bf16.msra.mxu0 0
        %801 = vmatprep.subr.bf16.mxu0 0
        %802 = vmatpush1.bf16.msra.mxu0 %v783
        %803 = vmatprep.subr.bf16.mxu0 0
        %804 = vmatpush1.bf16.msra.mxu0 %v782
        %805 = vmatprep.subr.bf16.mxu0 0
        %806 = vmatpush2.bf16.msra.mxu0 0
        %807 = vmatprep.subr.bf16.mxu0 0
        %808 = vmatpush2.bf16.msra.mxu0 0
        %809 = vmatprep.subr.bf16.mxu0 0
        %810 = vmatpush2.bf16.msra.mxu0 0
        %811 = vmatprep.subr.bf16.mxu0 0
        %812 = vmatpush2.bf16.msra.mxu0 0
        %813 = vmatprep.subr.bf16.mxu0 0
        %814 = vmatpush2.bf16.msra.mxu0 0
        %815 = vmatprep.subr.bf16.mxu0 0
        %816 = vmatpush2.bf16.msra.mxu0 0
        %817 = vmatprep.subr.bf16.mxu0 0
        %818 = vmatpush2.bf16.msra.mxu0 0
        %819 = vmatprep.subr.bf16.mxu0 0
        %820 = vmatpush2.bf16.msra.mxu0 0
        %821 = vmatprep.mubr.bf16.mxu0 0
        %822 = vmatmul.mubr.bf16.gmra.mxu0 %v787
        %v823 = vpop.f32.mrf.mxu0
        %v824 = vadd.f32 %v772, %v823
        %v825 = vpop.f32.mrf.mxu0
        %v826 = vpop.f32.mrf.mxu0
        %v827 = vpop.f32.mrf.mxu0
        %828 = vdwg.mxu0
        %v829 = vmul.f32 %v824, 0.35355338
        %v830 = vpack.c.bf16 %v829, %v829
        %v831 = vpack.c.bf16 %v824, %v824
        %v833 = vlaneseq
        %v834 = vshrl.u32 %v833, 7
        %v835 = vsub.s32 0, %v834
        %v836 = vrot.slane %v730, %v835
        %839 = vrot.lane.b32.xlu0 %v831, 96
        %v840 = vpop.permute.xlu0 %839
        %vm841 = vcmask 64512
        %v843 = vsel %vm841, %v830, 0
        %v846 = vsel %vm841, %v840, 0
        %848 = vmatprep.subr.bf16.mxu0 0
        %849 = vmatpush1.bf16.xpose.msra.mxu0 0
        %850 = vmatprep.subr.bf16.mxu0 0
        %851 = vmatpush1.bf16.xpose.msra.mxu0 0
        %852 = vmatprep.subr.bf16.mxu0 0
        %853 = vmatpush1.bf16.xpose.msra.mxu0 0
        %854 = vmatprep.subr.bf16.mxu0 0
        %855 = vmatpush1.bf16.xpose.msra.mxu0 0
        %856 = vmatprep.subr.bf16.mxu0 0
        %857 = vmatpush1.bf16.xpose.msra.mxu0 0
        %858 = vmatprep.subr.bf16.mxu0 0
        %859 = vmatpush1.bf16.xpose.msra.mxu0 0
        %860 = vmatprep.subr.bf16.mxu0 0
        %861 = vmatpush1.bf16.xpose.msra.mxu0 0
        %862 = vmatprep.subr.bf16.mxu0 0
        %863 = vmatpush1.bf16.xpose.msra.mxu0 %v846
        %864 = vmatprep.subr.bf16.mxu0 0
        %865 = vmatpush2.bf16.xpose.msra.mxu0 0
        %866 = vmatprep.subr.bf16.mxu0 0
        %867 = vmatpush2.bf16.xpose.msra.mxu0 0
        %868 = vmatprep.subr.bf16.mxu0 0
        %869 = vmatpush2.bf16.xpose.msra.mxu0 0
        %870 = vmatprep.subr.bf16.mxu0 0
        %871 = vmatpush2.bf16.xpose.msra.mxu0 0
        %872 = vmatprep.subr.bf16.mxu0 0
        %873 = vmatpush2.bf16.xpose.msra.mxu0 0
        %874 = vmatprep.subr.bf16.mxu0 0
        %875 = vmatpush2.bf16.xpose.msra.mxu0 0
        %876 = vmatprep.subr.bf16.mxu0 0
        %877 = vmatpush2.bf16.xpose.msra.mxu0 0
        %878 = vmatprep.subr.bf16.mxu0 0
        %879 = vmatpush2.bf16.xpose.msra.mxu0 0
        %880 = vmatprep.mubr.bf16.mxu0 0
        %881 = vmatmul.mubr.bf16.gmra.mxu0 %v843
        %v882 = vpop.f32.mrf.mxu0
        %v883 = vadd.f32 %v836, %v882
        %v884 = vpop.f32.mrf.mxu0
        %v885 = vpop.f32.mrf.mxu0
        %v886 = vpop.f32.mrf.mxu0
        %887 = vdwg.mxu0
        %v888 = vsel %vm841, %v883, -inf
        %889 = vmax.xlane.f32.xlu0 %v888
        %v890 = vpop.xlane.xlu0 %889
        %v891 = vsub.f32 %v883, %v890
        %v892 = vmul.f32 %v891, 1.442695
        %v893 = vpow.pop %v892
        %v894 = vsel %vm841, %v893, 0.0
        %895 = vadd.xlane.f32.xlu0 %v894
        %v896 = vpop.xlane.xlu0 %895
        %v897 = vrcp.pop %v896
        %v898 = vmul.f32 %v893, %v897
        %v899 = vpack.c.bf16 %v898, %v898
        %900 = vrot.lane.b32.xlu0 %v831, 64
        %v901 = vpop.permute.xlu0 %900
        %v903 = vsel %vm841, %v899, 0
        %vm905 = vcmask 1043456
        %v907 = vsel %vm905, %v901, 0
        %909 = vmatprep.subr.bf16.mxu0 0
        %910 = vmatpush1.bf16.msra.mxu0 0
        %911 = vmatprep.subr.bf16.mxu0 0
        %912 = vmatpush1.bf16.msra.mxu0 0
        %913 = vmatprep.subr.bf16.mxu0 0
        %914 = vmatpush1.bf16.msra.mxu0 0
        %915 = vmatprep.subr.bf16.mxu0 0
        %916 = vmatpush1.bf16.msra.mxu0 0
        %917 = vmatprep.subr.bf16.mxu0 0
        %918 = vmatpush1.bf16.msra.mxu0 0
        %919 = vmatprep.subr.bf16.mxu0 0
        %920 = vmatpush1.bf16.msra.mxu0 0
        %921 = vmatprep.subr.bf16.mxu0 0
        %922 = vmatpush1.bf16.msra.mxu0 0
        %923 = vmatprep.subr.bf16.mxu0 0
        %924 = vmatpush1.bf16.msra.mxu0 %v907
        %925 = vmatprep.subr.bf16.mxu0 0
        %926 = vmatpush2.bf16.msra.mxu0 0
        %927 = vmatprep.subr.bf16.mxu0 0
        %928 = vmatpush2.bf16.msra.mxu0 0
        %929 = vmatprep.subr.bf16.mxu0 0
        %930 = vmatpush2.bf16.msra.mxu0 0
        %931 = vmatprep.subr.bf16.mxu0 0
        %932 = vmatpush2.bf16.msra.mxu0 0
        %933 = vmatprep.subr.bf16.mxu0 0
        %934 = vmatpush2.bf16.msra.mxu0 0
        %935 = vmatprep.subr.bf16.mxu0 0
        %936 = vmatpush2.bf16.msra.mxu0 0
        %937 = vmatprep.subr.bf16.mxu0 0
        %938 = vmatpush2.bf16.msra.mxu0 0
        %939 = vmatprep.subr.bf16.mxu0 0
        %940 = vmatpush2.bf16.msra.mxu0 0
        %941 = vmatprep.mubr.bf16.mxu0 0
        %942 = vmatmul.mubr.bf16.gmra.mxu0 %v903
        %v943 = vpop.f32.mrf.mxu0
        %v944 = vadd.f32 0.0, %v943
        %v945 = vpop.f32.mrf.mxu0
        %v946 = vpop.f32.mrf.mxu0
        %v947 = vpop.f32.mrf.mxu0
        %948 = vdwg.mxu0
        %v949 = vpack.c.bf16 %v944, %v944
        %vm950 = vcmask 60416
        %951 = vst.msk [vmem:[#allocation2] sm:$0xf] %vm950, %v949
        %953 = vrot.lane.b32.xlu0 %v830, 120
        %v954 = vpop.permute.xlu0 %953
        %955 = vrot.lane.b32.xlu0 %v831, 88
        %v956 = vpop.permute.xlu0 %955
        %v958 = vsel %vm841, %v954, 0
        %v961 = vsel %vm841, %v956, 0
        %963 = vmatprep.subr.bf16.mxu0 0
        %964 = vmatpush1.bf16.xpose.msra.mxu0 0
        %965 = vmatprep.subr.bf16.mxu0 0
        %966 = vmatpush1.bf16.xpose.msra.mxu0 0
        %967 = vmatprep.subr.bf16.mxu0 0
        %968 = vmatpush1.bf16.xpose.msra.mxu0 0
        %969 = vmatprep.subr.bf16.mxu0 0
        %970 = vmatpush1.bf16.xpose.msra.mxu0 0
        %971 = vmatprep.subr.bf16.mxu0 0
        %972 = vmatpush1.bf16.xpose.msra.mxu0 0
        %973 = vmatprep.subr.bf16.mxu0 0
        %974 = vmatpush1.bf16.xpose.msra.mxu0 0
        %975 = vmatprep.subr.bf16.mxu0 0
        %976 = vmatpush1.bf16.xpose.msra.mxu0 0
        %977 = vmatprep.subr.bf16.mxu0 0
        %978 = vmatpush1.bf16.xpose.msra.mxu0 %v961
        %979 = vmatprep.subr.bf16.mxu0 0
        %980 = vmatpush2.bf16.xpose.msra.mxu0 0
        %981 = vmatprep.subr.bf16.mxu0 0
        %982 = vmatpush2.bf16.xpose.msra.mxu0 0
        %983 = vmatprep.subr.bf16.mxu0 0
        %984 = vmatpush2.bf16.xpose.msra.mxu0 0
        %985 = vmatprep.subr.bf16.mxu0 0
        %986 = vmatpush2.bf16.xpose.msra.mxu0 0
        %987 = vmatprep.subr.bf16.mxu0 0
        %988 = vmatpush2.bf16.xpose.msra.mxu0 0
        %989 = vmatprep.subr.bf16.mxu0 0
        %990 = vmatpush2.bf16.xpose.msra.mxu0 0
        %991 = vmatprep.subr.bf16.mxu0 0
        %992 = vmatpush2.bf16.xpose.msra.mxu0 0
        %993 = vmatprep.subr.bf16.mxu0 0
        %994 = vmatpush2.bf16.xpose.msra.mxu0 0
        %995 = vmatprep.mubr.bf16.mxu0 0
        %996 = vmatmul.mubr.bf16.gmra.mxu0 %v958
        %v997 = vpop.f32.mrf.mxu0
        %v998 = vadd.f32 %v836, %v997
        %v999 = vpop.f32.mrf.mxu0
        %v1000 = vpop.f32.mrf.mxu0
        %v1001 = vpop.f32.mrf.mxu0
        %1002 = vdwg.mxu0
        %v1003 = vsel %vm841, %v998, -inf
        %1004 = vmax.xlane.f32.xlu0 %v1003
        %v1005 = vpop.xlane.xlu0 %1004
        %v1006 = vsub.f32 %v998, %v1005
        %v1007 = vmul.f32 %v1006, 1.442695
        %v1008 = vpow.pop %v1007
        %v1009 = vsel %vm841, %v1008, 0.0
        %1010 = vadd.xlane.f32.xlu0 %v1009
        %v1011 = vpop.xlane.xlu0 %1010
        %v1012 = vrcp.pop %v1011
        %v1013 = vmul.f32 %v1008, %v1012
        %v1014 = vpack.c.bf16 %v1013, %v1013
        %1015 = vrot.lane.b32.xlu0 %v831, 56
        %v1016 = vpop.permute.xlu0 %1015
        %v1018 = vsel %vm841, %v1014, 0
        %v1021 = vsel %vm905, %v1016, 0
        %1023 = vmatprep.subr.bf16.mxu0 0
        %1024 = vmatpush1.bf16.msra.mxu0 0
        %1025 = vmatprep.subr.bf16.mxu0 0
        %1026 = vmatpush1.bf16.msra.mxu0 0
        %1027 = vmatprep.subr.bf16.mxu0 0
        %1028 = vmatpush1.bf16.msra.mxu0 0
        %1029 = vmatprep.subr.bf16.mxu0 0
        %1030 = vmatpush1.bf16.msra.mxu0 0
        %1031 = vmatprep.subr.bf16.mxu0 0
        %1032 = vmatpush1.bf16.msra.mxu0 0
        %1033 = vmatprep.subr.bf16.mxu0 0
        %1034 = vmatpush1.bf16.msra.mxu0 0
        %1035 = vmatprep.subr.bf16.mxu0 0
        %1036 = vmatpush1.bf16.msra.mxu0 0
        %1037 = vmatprep.subr.bf16.mxu0 0
        %1038 = vmatpush1.bf16.msra.mxu0 %v1021
        %1039 = vmatprep.subr.bf16.mxu0 0
        %1040 = vmatpush2.bf16.msra.mxu0 0
        %1041 = vmatprep.subr.bf16.mxu0 0
        %1042 = vmatpush2.bf16.msra.mxu0 0
        %1043 = vmatprep.subr.bf16.mxu0 0
        %1044 = vmatpush2.bf16.msra.mxu0 0
        %1045 = vmatprep.subr.bf16.mxu0 0
        %1046 = vmatpush2.bf16.msra.mxu0 0
        %1047 = vmatprep.subr.bf16.mxu0 0
        %1048 = vmatpush2.bf16.msra.mxu0 0
        %1049 = vmatprep.subr.bf16.mxu0 0
        %1050 = vmatpush2.bf16.msra.mxu0 0
        %1051 = vmatprep.subr.bf16.mxu0 0
        %1052 = vmatpush2.bf16.msra.mxu0 0
        %1053 = vmatprep.subr.bf16.mxu0 0
        %1054 = vmatpush2.bf16.msra.mxu0 0
        %1055 = vmatprep.mubr.bf16.mxu0 0
        %1056 = vmatmul.mubr.bf16.gmra.mxu0 %v1018
        %v1057 = vpop.f32.mrf.mxu0
        %v1058 = vadd.f32 0.0, %v1057
        %v1059 = vpop.f32.mrf.mxu0
        %v1060 = vpop.f32.mrf.mxu0
        %v1061 = vpop.f32.mrf.mxu0
        %1062 = vdwg.mxu0
        %v1063 = vpack.c.bf16 %v1058, %v1058
        %v1065 = vunpack.c.l.b16 %v1063
        %v1066 = vpack.c.b16 %v1065, %v1065
        %1067 = vrot.lane.b32.xlu0 %v1066, 8
        %v1068 = vpop.permute.xlu0 %1067
        %vm1070 = vcmask 126016
        %1071 = vst.msk [vmem:[#allocation2] sm:$0xf] %vm1070, %v1068
        %1072 = vrot.lane.b32.xlu0 %v830, 112
        %v1073 = vpop.permute.xlu0 %1072
        %1074 = vrot.lane.b32.xlu0 %v831, 80
        %v1075 = vpop.permute.xlu0 %1074
        %v1077 = vsel %vm841, %v1073, 0
        %v1080 = vsel %vm841, %v1075, 0
        %1082 = vmatprep.subr.bf16.mxu0 0
        %1083 = vmatpush1.bf16.xpose.msra.mxu0 0
        %1084 = vmatprep.subr.bf16.mxu0 0
        %1085 = vmatpush1.bf16.xpose.msra.mxu0 0
        %1086 = vmatprep.subr.bf16.mxu0 0
        %1087 = vmatpush1.bf16.xpose.msra.mxu0 0
        %1088 = vmatprep.subr.bf16.mxu0 0
        %1089 = vmatpush1.bf16.xpose.msra.mxu0 0
        %1090 = vmatprep.subr.bf16.mxu0 0
        %1091 = vmatpush1.bf16.xpose.msra.mxu0 0
        %1092 = vmatprep.subr.bf16.mxu0 0
        %1093 = vmatpush1.bf16.xpose.msra.mxu0 0
        %1094 = vmatprep.subr.bf16.mxu0 0
        %1095 = vmatpush1.bf16.xpose.msra.mxu0 0
        %1096 = vmatprep.subr.bf16.mxu0 0
        %1097 = vmatpush1.bf16.xpose.msra.mxu0 %v1080
        %1098 = vmatprep.subr.bf16.mxu0 0
        %1099 = vmatpush2.bf16.xpose.msra.mxu0 0
        %1100 = vmatprep.subr.bf16.mxu0 0
        %1101 = vmatpush2.bf16.xpose.msra.mxu0 0
        %1102 = vmatprep.subr.bf16.mxu0 0
        %1103 = vmatpush2.bf16.xpose.msra.mxu0 0
        %1104 = vmatprep.subr.bf16.mxu0 0
        %1105 = vmatpush2.bf16.xpose.msra.mxu0 0
        %1106 = vmatprep.subr.bf16.mxu0 0
        %1107 = vmatpush2.bf16.xpose.msra.mxu0 0
        %1108 = vmatprep.subr.bf16.mxu0 0
        %1109 = vmatpush2.bf16.xpose.msra.mxu0 0
        %1110 = vmatprep.subr.bf16.mxu0 0
        %1111 = vmatpush2.bf16.xpose.msra.mxu0 0
        %1112 = vmatprep.subr.bf16.mxu0 0
        %1113 = vmatpush2.bf16.xpose.msra.mxu0 0
        %1114 = vmatprep.mubr.bf16.mxu0 0
        %1115 = vmatmul.mubr.bf16.gmra.mxu0 %v1077
        %v1116 = vpop.f32.mrf.mxu0
        %v1117 = vadd.f32 %v836, %v1116
        %v1118 = vpop.f32.mrf.mxu0
        %v1119 = vpop.f32.mrf.mxu0
        %v1120 = vpop.f32.mrf.mxu0
        %1121 = vdwg.mxu0
        %v1122 = vsel %vm841, %v1117, -inf
        %1123 = vmax.xlane.f32.xlu0 %v1122
        %v1124 = vpop.xlane.xlu0 %1123
        %v1125 = vsub.f32 %v1117, %v1124
        %v1126 = vmul.f32 %v1125, 1.442695
        %v1127 = vpow.pop %v1126
        %v1128 = vsel %vm841, %v1127, 0.0
        %1129 = vadd.xlane.f32.xlu0 %v1128
        %v1130 = vpop.xlane.xlu0 %1129
        %v1131 = vrcp.pop %v1130
        %v1132 = vmul.f32 %v1127, %v1131
        %v1133 = vpack.c.bf16 %v1132, %v1132
        %1134 = vrot.lane.b32.xlu0 %v831, 48
        %v1135 = vpop.permute.xlu0 %1134
        %v1137 = vsel %vm841, %v1133, 0
        %v1140 = vsel %vm905, %v1135, 0
        %1142 = vmatprep.subr.bf16.mxu0 0
        %1143 = vmatpush1.bf16.msra.mxu0 0
        %1144 = vmatprep.subr.bf16.mxu0 0
        %1145 = vmatpush1.bf16.msra.mxu0 0
        %1146 = vmatprep.subr.bf16.mxu0 0
        %1147 = vmatpush1.bf16.msra.mxu0 0
        %1148 = vmatprep.subr.bf16.mxu0 0
        %1149 = vmatpush1.bf16.msra.mxu0 0
        %1150 = vmatprep.subr.bf16.mxu0 0
        %1151 = vmatpush1.bf16.msra.mxu0 0
        %1152 = vmatprep.subr.bf16.mxu0 0
        %1153 = vmatpush1.bf16.msra.mxu0 0
        %1154 = vmatprep.subr.bf16.mxu0 0
        %1155 = vmatpush1.bf16.msra.mxu0 0
        %1156 = vmatprep.subr.bf16.mxu0 0
        %1157 = vmatpush1.bf16.msra.mxu0 %v1140
        %1158 = vmatprep.subr.bf16.mxu0 0
        %1159 = vmatpush2.bf16.msra.mxu0 0
        %1160 = vmatprep.subr.bf16.mxu0 0
        %1161 = vmatpush2.bf16.msra.mxu0 0
        %1162 = vmatprep.subr.bf16.mxu0 0
        %1163 = vmatpush2.bf16.msra.mxu0 0
        %1164 = vmatprep.subr.bf16.mxu0 0
        %1165 = vmatpush2.bf16.msra.mxu0 0
        %1166 = vmatprep.subr.bf16.mxu0 0
        %1167 = vmatpush2.bf16.msra.mxu0 0
        %1168 = vmatprep.subr.bf16.mxu0 0
        %1169 = vmatpush2.bf16.msra.mxu0 0
        %1170 = vmatprep.subr.bf16.mxu0 0
        %1171 = vmatpush2.bf16.msra.mxu0 0
        %1172 = vmatprep.subr.bf16.mxu0 0
        %1173 = vmatpush2.bf16.msra.mxu0 0
        %1174 = vmatprep.mubr.bf16.mxu0 0
        %1175 = vmatmul.mubr.bf16.gmra.mxu0 %v1137
        %v1176 = vpop.f32.mrf.mxu0
        %v1177 = vadd.f32 0.0, %v1176
        %v1178 = vpop.f32.mrf.mxu0
        %v1179 = vpop.f32.mrf.mxu0
        %v1180 = vpop.f32.mrf.mxu0
        %1181 = vdwg.mxu0
        %v1182 = vpack.c.bf16 %v1177, %v1177
        %v1184 = vunpack.c.l.b16 %v1182
        %v1185 = vpack.c.b16 %v1184, %v1184
        %1186 = vrot.lane.b32.xlu0 %v1185, 16
        %v1187 = vpop.permute.xlu0 %1186
        %vm1189 = vcmask 191616
        %1190 = vst.msk [vmem:[#allocation2] sm:$0xf] %vm1189, %v1187
        %1191 = vrot.lane.b32.xlu0 %v830, 104
        %v1192 = vpop.permute.xlu0 %1191
        %1193 = vrot.lane.b32.xlu0 %v831, 72
        %v1194 = vpop.permute.xlu0 %1193
        %v1196 = vsel %vm841, %v1192, 0
        %v1199 = vsel %vm841, %v1194, 0
        %1201 = vmatprep.subr.bf16.mxu0 0
        %1202 = vmatpush1.bf16.xpose.msra.mxu0 0
        %1203 = vmatprep.subr.bf16.mxu0 0
        %1204 = vmatpush1.bf16.xpose.msra.mxu0 0
        %1205 = vmatprep.subr.bf16.mxu0 0
        %1206 = vmatpush1.bf16.xpose.msra.mxu0 0
        %1207 = vmatprep.subr.bf16.mxu0 0
        %1208 = vmatpush1.bf16.xpose.msra.mxu0 0
        %1209 = vmatprep.subr.bf16.mxu0 0
        %1210 = vmatpush1.bf16.xpose.msra.mxu0 0
        %1211 = vmatprep.subr.bf16.mxu0 0
        %1212 = vmatpush1.bf16.xpose.msra.mxu0 0
        %1213 = vmatprep.subr.bf16.mxu0 0
        %1214 = vmatpush1.bf16.xpose.msra.mxu0 0
        %1215 = vmatprep.subr.bf16.mxu0 0
        %1216 = vmatpush1.bf16.xpose.msra.mxu0 %v1199
        %1217 = vmatprep.subr.bf16.mxu0 0
        %1218 = vmatpush2.bf16.xpose.msra.mxu0 0
        %1219 = vmatprep.subr.bf16.mxu0 0
        %1220 = vmatpush2.bf16.xpose.msra.mxu0 0
        %1221 = vmatprep.subr.bf16.mxu0 0
        %1222 = vmatpush2.bf16.xpose.msra.mxu0 0
        %1223 = vmatprep.subr.bf16.mxu0 0
        %1224 = vmatpush2.bf16.xpose.msra.mxu0 0
        %1225 = vmatprep.subr.bf16.mxu0 0
        %1226 = vmatpush2.bf16.xpose.msra.mxu0 0
        %1227 = vmatprep.subr.bf16.mxu0 0
        %1228 = vmatpush2.bf16.xpose.msra.mxu0 0
        %1229 = vmatprep.subr.bf16.mxu0 0
        %1230 = vmatpush2.bf16.xpose.msra.mxu0 0
        %1231 = vmatprep.subr.bf16.mxu0 0
        %1232 = vmatpush2.bf16.xpose.msra.mxu0 0
        %1233 = vmatprep.mubr.bf16.mxu0 0
        %1234 = vmatmul.mubr.bf16.gmra.mxu0 %v1196
        %v1235 = vpop.f32.mrf.mxu0
        %v1236 = vadd.f32 %v836, %v1235
        %v1237 = vpop.f32.mrf.mxu0
        %v1238 = vpop.f32.mrf.mxu0
        %v1239 = vpop.f32.mrf.mxu0
        %1240 = vdwg.mxu0
        %v1241 = vsel %vm841, %v1236, -inf
        %1242 = vmax.xlane.f32.xlu0 %v1241
        %v1243 = vpop.xlane.xlu0 %1242
        %v1244 = vsub.f32 %v1236, %v1243
        %v1245 = vmul.f32 %v1244, 1.442695
        %v1246 = vpow.pop %v1245
        %v1247 = vsel %vm841, %v1246, 0.0
        %1248 = vadd.xlane.f32.xlu0 %v1247
        %v1249 = vpop.xlane.xlu0 %1248
        %v1250 = vrcp.pop %v1249
        %v1251 = vmul.f32 %v1246, %v1250
        %v1252 = vpack.c.bf16 %v1251, %v1251
        %1253 = vrot.lane.b32.xlu0 %v831, 40
        %v1254 = vpop.permute.xlu0 %1253
        %v1256 = vsel %vm841, %v1252, 0
        %v1259 = vsel %vm905, %v1254, 0
        %1261 = vmatprep.subr.bf16.mxu0 0
        %1262 = vmatpush1.bf16.msra.mxu0 0
        %1263 = vmatprep.subr.bf16.mxu0 0
        %1264 = vmatpush1.bf16.msra.mxu0 0
        %1265 = vmatprep.subr.bf16.mxu0 0
        %1266 = vmatpush1.bf16.msra.mxu0 0
        %1267 = vmatprep.subr.bf16.mxu0 0
        %1268 = vmatpush1.bf16.msra.mxu0 0
        %1269 = vmatprep.subr.bf16.mxu0 0
        %1270 = vmatpush1.bf16.msra.mxu0 0
        %1271 = vmatprep.subr.bf16.mxu0 0
        %1272 = vmatpush1.bf16.msra.mxu0 0
        %1273 = vmatprep.subr.bf16.mxu0 0
        %1274 = vmatpush1.bf16.msra.mxu0 0
        %1275 = vmatprep.subr.bf16.mxu0 0
        %1276 = vmatpush1.bf16.msra.mxu0 %v1259
        %1277 = vmatprep.subr.bf16.mxu0 0
        %1278 = vmatpush2.bf16.msra.mxu0 0
        %1279 = vmatprep.subr.bf16.mxu0 0
        %1280 = vmatpush2.bf16.msra.mxu0 0
        %1281 = vmatprep.subr.bf16.mxu0 0
        %1282 = vmatpush2.bf16.msra.mxu0 0
        %1283 = vmatprep.subr.bf16.mxu0 0
        %1284 = vmatpush2.bf16.msra.mxu0 0
        %1285 = vmatprep.subr.bf16.mxu0 0
        %1286 = vmatpush2.bf16.msra.mxu0 0
        %1287 = vmatprep.subr.bf16.mxu0 0
        %1288 = vmatpush2.bf16.msra.mxu0 0
        %1289 = vmatprep.subr.bf16.mxu0 0
        %1290 = vmatpush2.bf16.msra.mxu0 0
        %1291 = vmatprep.subr.bf16.mxu0 0
        %1292 = vmatpush2.bf16.msra.mxu0 0
        %1293 = vmatprep.mubr.bf16.mxu0 0
        %1294 = vmatmul.mubr.bf16.gmra.mxu0 %v1256
        %v1295 = vpop.f32.mrf.mxu0
        %v1296 = vadd.f32 0.0, %v1295
        %v1297 = vpop.f32.mrf.mxu0
        %v1298 = vpop.f32.mrf.mxu0
        %v1299 = vpop.f32.mrf.mxu0
        %1300 = vdwg.mxu0
        %v1301 = vpack.c.bf16 %v1296, %v1296
        %v1303 = vunpack.c.l.b16 %v1301
        %v1304 = vpack.c.b16 %v1303, %v1303
        %1305 = vrot.lane.b32.xlu0 %v1304, 24
        %v1306 = vpop.permute.xlu0 %1305
        %vm1308 = vcmask 257216
        %1309 = vst.msk [vmem:[#allocation2] sm:$0xf] %vm1308, %v1306
        %v1310 = vld [vmem:[#allocation2] sm:$0xf]
        %v1311 = vld [vmem:[%s695] sm:$0xf]
        %v1312 = vld [vmem:[%s695 + $0x4] sm:$0xf]
        %v1313 = vld [vmem:[%s695 + $0x8] sm:$0xf]
        %v1314 = vld [vmem:[%s695 + $0xc] sm:$0xf]
        %v1319 = vunpack.c.l.b16 %v1311
        %v1320 = vunpack.c.l.b16 %v1312
        %v1321 = vunpack.c.l.b16 %v1313
        %v1322 = vunpack.c.l.b16 %v1314
        %v1323 = vpack.c.b16 %v1320, %v1319
        %v1324 = vpack.c.b16 %v1322, %v1321
        %v1328 = vsel %vm733, %v1310, 0
        %1330 = vmatprep.subr.bf16.mxu0 0
        %1331 = vmatpush1.bf16.msra.mxu0 0
        %1332 = vmatprep.subr.bf16.mxu0 0
        %1333 = vmatpush1.bf16.msra.mxu0 0
        %1334 = vmatprep.subr.bf16.mxu0 0
        %1335 = vmatpush1.bf16.msra.mxu0 0
        %1336 = vmatprep.subr.bf16.mxu0 0
        %1337 = vmatpush1.bf16.msra.mxu0 0
        %1338 = vmatprep.subr.bf16.mxu0 0
        %1339 = vmatpush1.bf16.msra.mxu0 0
        %1340 = vmatprep.subr.bf16.mxu0 0
        %1341 = vmatpush1.bf16.msra.mxu0 0
        %1342 = vmatprep.subr.bf16.mxu0 0
        %1343 = vmatpush1.bf16.msra.mxu0 %v1324
        %1344 = vmatprep.subr.bf16.mxu0 0
        %1345 = vmatpush1.bf16.msra.mxu0 %v1323
        %1346 = vmatprep.subr.bf16.mxu0 0
        %1347 = vmatpush2.bf16.msra.mxu0 0
        %1348 = vmatprep.subr.bf16.mxu0 0
        %1349 = vmatpush2.bf16.msra.mxu0 0
        %1350 = vmatprep.subr.bf16.mxu0 0
        %1351 = vmatpush2.bf16.msra.mxu0 0
        %1352 = vmatprep.subr.bf16.mxu0 0
        %1353 = vmatpush2.bf16.msra.mxu0 0
        %1354 = vmatprep.subr.bf16.mxu0 0
        %1355 = vmatpush2.bf16.msra.mxu0 0
        %1356 = vmatprep.subr.bf16.mxu0 0
        %1357 = vmatpush2.bf16.msra.mxu0 0
        %1358 = vmatprep.subr.bf16.mxu0 0
        %1359 = vmatpush2.bf16.msra.mxu0 0
        %1360 = vmatprep.subr.bf16.mxu0 0
        %1361 = vmatpush2.bf16.msra.mxu0 0
        %1362 = vmatprep.mubr.bf16.mxu0 0
        %1363 = vmatmul.mubr.bf16.gmra.mxu0 %v1328
        %v1364 = vpop.f32.mrf.mxu0
        %v1365 = vadd.f32 0.0, %v1364
        %v1366 = vpop.f32.mrf.mxu0
        %v1367 = vpop.f32.mrf.mxu0
        %v1368 = vpop.f32.mrf.mxu0
        %1369 = vdwg.mxu0
        %v1370 = vadd.f32 %v729, %v1365
        %v1371 = vld [vmem:[%s698] sm:$0x1]
        %v1373 = vlaneseq
        %v1374 = vshrl.u32 %v1373, 7
        %v1375 = vsub.s32 0, %v1374
        %v1376 = vrot.slane %v1371, %v1375
        %v1378 = vadd.f32 %v1370, %v1376
        %v1379 = vld [vmem:[%s701] sm:$0x1]
        %v1380 = vld [vmem:[%s704] sm:$0x1]
        %v1381 = vsel %vm733, %v1378, 0.0
        %1382 = vadd.xlane.f32.xlu0 %v1381
        %v1383 = vpop.xlane.xlu0 %1382
        %v1384 = vmul.f32 %v1383, %v737
        %v1385 = vsub.f32 %v1378, %v1384
        %v1386 = vmul.f32 %v1385, %v1385
        %v1387 = vsel %vm733, %v1386, 0.0
        %1388 = vadd.xlane.f32.xlu0 %v1387
        %v1389 = vpop.xlane.xlu0 %1388
        %v1390 = vmul.f32 %v1389, %v737
        %v1391 = vadd.f32 %v1390, 1e-05
        %v1392 = vrsqrt.pop %v1391
        %v1393 = vmul.f32 %v1385, %v1392
        %v1395 = vlaneseq
        %v1396 = vshrl.u32 %v1395, 7
        %v1397 = vsub.s32 0, %v1396
        %v1398 = vrot.slane %v1379, %v1397
        %v1400 = vmul.f32 %v1393, %v1398
        %v1402 = vlaneseq
        %v1403 = vshrl.u32 %v1402, 7
        %v1404 = vsub.s32 0, %v1403
        %v1405 = vrot.slane %v1380, %v1404
        %v1407 = vadd.f32 %v1400, %v1405
        %v1408 = vpack.c.bf16 %v1407, %v1407
        %v1409 = vld [vmem:[%s709] sm:$0xf]
        %v1410 = vld [vmem:[%s709 + $0x4] sm:$0xf]
        %v1411 = vld [vmem:[%s709 + $0x8] sm:$0xf]
        %v1412 = vld [vmem:[%s709 + $0xc] sm:$0xf]
        %v1413 = vld [vmem:[%s712] sm:$0x1]
        %v1415 = vlaneseq
        %v1416 = vshrl.u32 %v1415, 7
        %v1417 = vsub.s32 0, %v1416
        %v1418 = vrot.slane %v1413, %v1417
        %v1424 = vunpack.c.l.b16 %v1409
        %v1425 = vunpack.c.l.b16 %v1410
        %v1426 = vunpack.c.l.b16 %v1411
        %v1427 = vunpack.c.l.b16 %v1412
        %v1428 = vpack.c.b16 %v1425, %v1424
        %v1429 = vpack.c.b16 %v1427, %v1426
        %v1433 = vsel %vm733, %v1408, 0
        %1435 = vmatprep.subr.bf16.mxu0 0
        %1436 = vmatpush1.bf16.msra.mxu0 0
        %1437 = vmatprep.subr.bf16.mxu0 0
        %1438 = vmatpush1.bf16.msra.mxu0 0
        %1439 = vmatprep.subr.bf16.mxu0 0
        %1440 = vmatpush1.bf16.msra.mxu0 0
        %1441 = vmatprep.subr.bf16.mxu0 0
        %1442 = vmatpush1.bf16.msra.mxu0 0
        %1443 = vmatprep.subr.bf16.mxu0 0
        %1444 = vmatpush1.bf16.msra.mxu0 0
        %1445 = vmatprep.subr.bf16.mxu0 0
        %1446 = vmatpush1.bf16.msra.mxu0 0
        %1447 = vmatprep.subr.bf16.mxu0 0
        %1448 = vmatpush1.bf16.msra.mxu0 %v1429
        %1449 = vmatprep.subr.bf16.mxu0 0
        %1450 = vmatpush1.bf16.msra.mxu0 %v1428
        %1451 = vmatprep.subr.bf16.mxu0 0
        %1452 = vmatpush2.bf16.msra.mxu0 0
        %1453 = vmatprep.subr.bf16.mxu0 0
        %1454 = vmatpush2.bf16.msra.mxu0 0
        %1455 = vmatprep.subr.bf16.mxu0 0
        %1456 = vmatpush2.bf16.msra.mxu0 0
        %1457 = vmatprep.subr.bf16.mxu0 0
        %1458 = vmatpush2.bf16.msra.mxu0 0
        %1459 = vmatprep.subr.bf16.mxu0 0
        %1460 = vmatpush2.bf16.msra.mxu0 0
        %1461 = vmatprep.subr.bf16.mxu0 0
        %1462 = vmatpush2.bf16.msra.mxu0 0
        %1463 = vmatprep.subr.bf16.mxu0 0
        %1464 = vmatpush2.bf16.msra.mxu0 0
        %1465 = vmatprep.subr.bf16.mxu0 0
        %1466 = vmatpush2.bf16.msra.mxu0 0
        %1467 = vmatprep.mubr.bf16.mxu0 0
        %1468 = vmatmul.mubr.bf16.gmra.mxu0 %v1433
        %v1469 = vpop.f32.mrf.mxu0
        %v1470 = vadd.f32 %v1418, %v1469
        %v1471 = vpop.f32.mrf.mxu0
        %v1472 = vpop.f32.mrf.mxu0
        %v1473 = vpop.f32.mrf.mxu0
        %1474 = vdwg.mxu0
        %v1475 = vmax.f32 %v1470, 0.0
        %v1476 = vpack.c.bf16 %v1475, %v1475
        %v1477 = vld [vmem:[%s717] sm:$0xf]
        %v1478 = vld [vmem:[%s717 + $0x4] sm:$0xf]
        %v1479 = vld [vmem:[%s717 + $0x8] sm:$0xf]
        %v1480 = vld [vmem:[%s717 + $0xc] sm:$0xf]
        %v1481 = vld [vmem:[%s717 + $0x10] sm:$0xf]
        %v1482 = vld [vmem:[%s717 + $0x14] sm:$0xf]
        %v1483 = vld [vmem:[%s717 + $0x18] sm:$0xf]
        %v1484 = vld [vmem:[%s717 + $0x1c] sm:$0xf]
        %v1485 = vld [vmem:[%s720] sm:$0x1]
        %v1487 = vlaneseq
        %v1488 = vshrl.u32 %v1487, 7
        %v1489 = vsub.s32 0, %v1488
        %v1490 = vrot.slane %v1485, %v1489
        %v1500 = vunpack.c.l.b16 %v1477
        %v1501 = vunpack.c.l.b16 %v1478
        %v1502 = vunpack.c.l.b16 %v1479
        %v1503 = vunpack.c.l.b16 %v1480
        %v1504 = vunpack.c.l.b16 %v1481
        %v1505 = vunpack.c.l.b16 %v1482
        %v1506 = vunpack.c.l.b16 %v1483
        %v1507 = vunpack.c.l.b16 %v1484
        %v1508 = vpack.c.b16 %v1501, %v1500
        %v1509 = vpack.c.b16 %v1503, %v1502
        %v1510 = vpack.c.b16 %v1505, %v1504
        %v1511 = vpack.c.b16 %v1507, %v1506
        %vm1516 = vcmask 523264
        %v1518 = vsel %vm1516, %v1476, 0
        %1520 = vmatprep.subr.bf16.mxu0 0
        %1521 = vmatpush1.bf16.msra.mxu0 0
        %1522 = vmatprep.subr.bf16.mxu0 0
        %1523 = vmatpush1.bf16.msra.mxu0 0
        %1524 = vmatprep.subr.bf16.mxu0 0
        %1525 = vmatpush1.bf16.msra.mxu0 0
        %1526 = vmatprep.subr.bf16.mxu0 0
        %1527 = vmatpush1.bf16.msra.mxu0 0
        %1528 = vmatprep.subr.bf16.mxu0 0
        %1529 = vmatpush1.bf16.msra.mxu0 %v1511
        %1530 = vmatprep.subr.bf16.mxu0 0
        %1531 = vmatpush1.bf16.msra.mxu0 %v1510
        %1532 = vmatprep.subr.bf16.mxu0 0
        %1533 = vmatpush1.bf16.msra.mxu0 %v1509
        %1534 = vmatprep.subr.bf16.mxu0 0
        %1535 = vmatpush1.bf16.msra.mxu0 %v1508
        %1536 = vmatprep.subr.bf16.mxu0 0
        %1537 = vmatpush2.bf16.msra.mxu0 0
        %1538 = vmatprep.subr.bf16.mxu0 0
        %1539 = vmatpush2.bf16.msra.mxu0 0
        %1540 = vmatprep.subr.bf16.mxu0 0
        %1541 = vmatpush2.bf16.msra.mxu0 0
        %1542 = vmatprep.subr.bf16.mxu0 0
        %1543 = vmatpush2.bf16.msra.mxu0 0
        %1544 = vmatprep.subr.bf16.mxu0 0
        %1545 = vmatpush2.bf16.msra.mxu0 0
        %1546 = vmatprep.subr.bf16.mxu0 0
        %1547 = vmatpush2.bf16.msra.mxu0 0
        %1548 = vmatprep.subr.bf16.mxu0 0
        %1549 = vmatpush2.bf16.msra.mxu0 0
        %1550 = vmatprep.subr.bf16.mxu0 0
        %1551 = vmatpush2.bf16.msra.mxu0 0
        %1552 = vmatprep.mubr.bf16.mxu0 0
        %1553 = vmatmul.mubr.bf16.gmra.mxu0 %v1518
        %v1554 = vpop.f32.mrf.mxu0
        %v1555 = vadd.f32 %v1490, %v1554
        %v1556 = vpop.f32.mrf.mxu0
        %v1557 = vpop.f32.mrf.mxu0
        %v1558 = vpop.f32.mrf.mxu0
        %1559 = vdwg.mxu0
        %v1560 = vadd.f32 %v1378, %v1555
        %1561 = vst.msk [vmem:[%s676] sm:$0xff] %vm733, %v1560
        %s1562 = sand.u32 %s418, 1
        %s1563 = scalar_lea.sflag [#allocation5], %s1562
        %s1564 = sand.u32 %s418, 1
        %s1565 = smul.addr %s1564, 8
        %s1566 = scalar_lea.vmem [#allocation8], %s1565
        // Predicated region
        $region89: #{tpu_custom_call.1} parent=75 // pred_check
          %p1567 = pneg %p428
        $region90: #{tpu_custom_call.1} parent=75 // pred_check_branch
          %1569 = sbr.rel (%p1567) target = $region92
        $region91: #{tpu_custom_call.1} parent=75 // pred_region
          %s1571 = ssub.s32 128, 128
          %1572 = vsyncadd %s1563, %s1571
          %s1573 = smul.addr %s38, 128
          %s1574 = scalar_lea.hbm %s14, %s1573
          %s1576 = sshll.u32 %s1566, 4
          %s1577 = int_to_ptr.vmem [resolvable:$true] %s1576
          %1579 = dma.vmem_to_hbm [thread:$0]  %s1577, 128, %s1574, %s1563
        $region92: #{tpu_custom_call.1} parent=75 // pred_fallthru
          _
      $region76: #{tpu_custom_call.1} parent=5 // pred_fallthru
        _
      %p1580 = scmp.le.s32.totalorder 2, %s29
      // Predicated region
      $region93: #{tpu_custom_call.1} parent=5 // pred_check
        %p1581 = pneg %p1580
      $region94: #{tpu_custom_call.1} parent=5 // pred_check_branch
        %1583 = sbr.rel (%p1581) target = $region96
      $region95: #{tpu_custom_call.1} parent=5 // pred_region
        %s1584 = ssub.s32 %s29, 2
        // Predicated region
        $region97: #{tpu_custom_call.1} parent=95 // pred_check
          %p1585 = pneg %p434
        $region98: #{tpu_custom_call.1} parent=95 // pred_check_branch
          %1587 = sbr.rel (%p1585) target = $region100
        $region99: #{tpu_custom_call.1} parent=95 // pred_region
          %s1588 = sand.u32 %s419, 1
          %s1589 = scalar_lea.sflag [#allocation5], %s1588
          %s1590 = sand.u32 %s419, 1
          %s1591 = smul.addr %s1590, 8
          %s1592 = scalar_lea.vmem [#allocation8], %s1591
          %1593 = dma.done %s1589, 128
        $region100: #{tpu_custom_call.1} parent=95 // pred_fallthru
          _
      $region96: #{tpu_custom_call.1} parent=5 // pred_fallthru
        _
    $region6: #{tpu_custom_call.1} parent=1 // loop_footer
      %s33 = sadd.s32 1, %s29
    $region7: #{tpu_custom_call.1} parent=1 // loop_footer_branch
      %28 = sbr.rel target = $region3
    $region8: #{tpu_custom_call.1} parent=1 // loop_exit
      _
    %1594 = vsyncpa [#allocation4], 1
    %s1595 = scalar_lea.sflag [#allocation4], 1
    %1596 = vsyncpa %s1595, 1
    %1597 = vsyncpa [#allocation7], 1
    %s1598 = scalar_lea.sflag [#allocation7], 1
    %1599 = vsyncpa %s1598, 1
    %1600 = vsyncpa [#allocation5], 1
    %s1601 = scalar_lea.sflag [#allocation5], 1
    %1602 = vsyncpa %s1601, 1

</llo_original>
